<compile_context>
chip_gen: v5e
topology: v5e:2x2
jax: 0.10.0
libtpu: 0.0.40
codegen_flags: <defaults>
</compile_context>

<pallas_src>
import functools

import jax
import jax.numpy as jnp
from jax.experimental import pallas as pl
from jax.experimental.pallas import tpu as pltpu

BN_EPS = 1e-5


# ---------------------------------------------------------------------------
# Small helpers (trace-time Python).
# ---------------------------------------------------------------------------
def _round_up(x, m):
    return (x + m - 1) // m * m


def _divisors_desc(n):
    return [d for d in range(n, 0, -1) if n % d == 0]


def _vmem_budget_bytes():
    """Per-generation VMEM budget: ~half of physical, clamped to [16, 96] MiB."""
    try:
        cap = int(pltpu.get_tpu_info().vmem_capacity_bytes)
    except Exception:
        return 32 * 1024 * 1024            # safe default on v5e/v6e/v7x
    return max(16 * 1024 * 1024, min(cap // 2, 96 * 1024 * 1024))


def _select_tiling(N, Cin_p, Cout, H, W, KH, KW, budget,
                   rows_per_tile, images_per_step):
    """Pick (rows-per-spatial-tile, #tiles, tile lanes, images-per-step)."""
    pad = (KH - 1) // 2
    lead = pad * W + pad

    def est(rows, nb):
        qt = rows * W
        lh_pad = _round_up(qt + 2 * lead, 128)
        lanes = nb * qt
        b = 0
        b += 2 * nb * Cin_p * lh_pad * 2        # input tile, bf16, double-buffered
        b += 2 * nb * Cout * qt * 4             # output tile, f32, double-buffered
        b += KH * KW * Cin_p * lanes * 2        # staged MXU operand (scratch)
        b += 3 * Cout * lanes * 4               # f32 matmul result + headroom
        b += 2 * (Cout * KH * KW * Cin_p * 2 + KW * lh_pad * 2 + 2 * Cout * 4)
        return b

    # Legal row counts: full image, or a divisor of H whose tile is 128-lane aligned
    # (required for the lane-tiled output BlockSpec; also keeps Qt a multiple of W
    # so the width-padding masks are tile-invariant).
    legal_rows = [r for r in _divisors_desc(H) if r == H or (r * W) % 128 == 0]
    if rows_per_tile is not None:
        rows = rows_per_tile
    else:
        rows = legal_rows[-1]                   # best-effort fallback
        for r in legal_rows:
            if est(r, 1) <= budget:
                rows = r
                break
    assert H % rows == 0, "rows_per_tile must divide H"
    T = H // rows
    Qt = rows * W
    assert T == 1 or Qt % 128 == 0, "spatial tile must be a multiple of 128 lanes"

    if images_per_step is not None:
        nb = images_per_step
    else:
        nb = 1
        if T == 1:                              # small images: widen lane axis
            for cand in _divisors_desc(N):
                if cand * Qt <= 4096 and est(rows, cand) <= budget:
                    nb = cand
                    break
    assert N % nb == 0, "images_per_step must divide N"
    return rows, T, Qt, nb, lead


# ---------------------------------------------------------------------------
# In-kernel staging: write the KH*KW shifted (Cin_p, Qt) windows of one image
# into the tap-folded MXU RHS, masking taps that would read the width padding.
# ---------------------------------------------------------------------------
def _stage_tap_operand(x_img, m_ref, staged_ref, col0, *, KH, KW, W, Qt, Cin_p):
    center = KW // 2
    shifted = []
    for kx in range(KW):
        if kx == center:
            shifted.append(x_img)
        else:
            # One masked copy per non-center kx, shared across all ky (invalid
            # columns depend only on (j - kx) mod W of the padded window index j).
            shifted.append(x_img * m_ref[kx:kx + 1, :])
    for ky in range(KH):
        for kx in range(KW):
            tap = ky * KW + kx
            off = ky * W + kx                       # static flat shift of this tap
            staged_ref[tap * Cin_p:(tap + 1) * Cin_p, col0:col0 + Qt] = (
                shifted[kx][:, off:off + Qt])


# ---------------------------------------------------------------------------
# Pass 1: folded-tap conv; emit only per-channel sum / sum-of-squares (no conv
# intermediate is written to HBM).
# ---------------------------------------------------------------------------
def _conv_stats_kernel(x_ref, w_ref, m_ref, sum_ref, sq_ref, staged_ref,
                       *, KH, KW, W, Qt, Cin_p, Nb):
    # x_ref:   (1, Nb, Cin_p, Lh_pad) bf16  halo'd, flattened, lane-padded tiles
    # w_ref:   (Cout, KH*KW*Cin_p)    bf16  tap-folded weights
    # m_ref:   (KW, Lh_pad)           bf16  width-padding column masks
    # sum/sq:  (1, Cout, 1)           f32   per-step partial BN statistics
    # staged:  (KH*KW*Cin_p, Nb*Qt)   bf16  VMEM scratch (MXU RHS)
    for i in range(Nb):
        _stage_tap_operand(x_ref[0, i], m_ref, staged_ref, i * Qt,
                           KH=KH, KW=KW, W=W, Qt=Qt, Cin_p=Cin_p)
    acc = jnp.dot(w_ref[...], staged_ref[...],
                  preferred_element_type=jnp.float32)          # (Cout, Nb*Qt) f32
    sum_ref[0] = jnp.sum(acc, axis=1, keepdims=True)
    sq_ref[0] = jnp.sum(acc * acc, axis=1, keepdims=True)


# ---------------------------------------------------------------------------
# Pass 2: recompute the folded-tap conv, apply the folded BN affine + ReLU.
# ---------------------------------------------------------------------------
def _conv_bn_relu_kernel(x_ref, w_ref, m_ref, s_ref, b_ref, o_ref, staged_ref,
                         *, KH, KW, W, Qt, Cin_p, Nb):
    for i in range(Nb):
        _stage_tap_operand(x_ref[0, i], m_ref, staged_ref, i * Qt,
                           KH=KH, KW=KW, W=W, Qt=Qt, Cin_p=Cin_p)
    acc = jnp.dot(w_ref[...], staged_ref[...],
                  preferred_element_type=jnp.float32)          # (Cout, Nb*Qt) f32
    y = jnp.maximum(acc * s_ref[...] + b_ref[...], 0.0)
    for i in range(Nb):
        o_ref[i] = y[:, i * Qt:(i + 1) * Qt]                   # lane-dense store


# ---------------------------------------------------------------------------
# Wrapper: CNNBlock forward (module defaults: 3x3 kernel, stride 1, padding 1).
# ---------------------------------------------------------------------------
@functools.partial(jax.jit, static_argnames=("rows_per_tile", "images_per_step"))
def cnn_block_forward(x_nchw, conv_w, conv_b, bn_gamma, bn_beta,
                      rows_per_tile=None, images_per_step=None):
    """x_nchw: (N, Cin, H, W) f32. conv_w: (Cout, Cin, K, K). Returns (N, Cout, H, W)."""
    # conv_b is accepted for interface parity but unused: training-mode BatchNorm
    # subtracts the per-channel batch mean right after the conv, so a constant
    # per-channel bias cancels exactly (not valid for eval-mode running stats).
    del conv_b
    N, Cin, H, W = x_nchw.shape
    Cout, Cin_w, KH, KW = conv_w.shape
    assert Cin_w == Cin and KH == KW and KH % 2 == 1, "odd square kernel expected"
    pad = (KH - 1) // 2                      # module default: "same" padding, stride 1
    Q = H * W
    Cin_p = _round_up(Cin, 8)                # sublane-aligned staging writes

    budget = _vmem_budget_bytes()
    rows, T, Qt, Nb, lead = _select_tiling(N, Cin_p, Cout, H, W, KH, KW, budget,
                                           rows_per_tile, images_per_step)
    NB = N // Nb
    Lh = Qt + 2 * lead
    Lh_pad = _round_up(Lh, 128)              # lane-dense input DMAs

    # --- bf16 MXU operands (f32 accumulation happens inside the kernels) ------
    x_flat = x_nchw.astype(jnp.bfloat16).reshape(N, Cin, Q)
    x_flat = jnp.pad(x_flat, ((0, 0), (0, Cin_p - Cin), (0, 0)))
    x_hpad = jnp.pad(x_flat, ((0, 0), (0, 0), (lead, lead)))   # (N, Cin_p, Q+2*lead)

    # Per-tile halo'd windows: spatial tile t needs padded columns [t*Qt, t*Qt+Lh).
    starts = jnp.arange(T, dtype=jnp.int32) * Qt
    idx = starts[:, None] + jnp.arange(Lh, dtype=jnp.int32)[None, :]   # (T, Lh)
    xt = x_hpad[:, :, idx]                                             # (N, Cin_p, T, Lh)
    xt = jnp.transpose(xt, (0, 2, 1, 3))                               # (N, T, Cin_p, Lh)
    xt = jnp.pad(xt, ((0, 0), (0, 0), (0, 0), (0, Lh_pad - Lh)))
    xt = xt.reshape(NB, Nb, T, Cin_p, Lh_pad)
    xt = jnp.transpose(xt, (0, 2, 1, 3, 4)).reshape(NB * T, Nb, Cin_p, Lh_pad)

    # Tap-folded weights: contraction order (ky, kx, ci) matches the staged RHS.
    w_pad = jnp.pad(conv_w, ((0, 0), (0, Cin_p - Cin), (0, 0), (0, 0)))
    w_folded = jnp.transpose(w_pad, (0, 2, 3, 1)).reshape(Cout, KH * KW * Cin_p)
    w_folded = w_folded.astype(jnp.bfloat16)

    # Width-padding column masks over the padded-window index j (one per kx tap,
    # shared across ky): output column c = (j - kx) mod W must be a valid read.
    j = jnp.arange(Lh_pad, dtype=jnp.int32)
    masks = jnp.stack(
        [(jnp.mod(j - kx, W) >= pad - kx) & (jnp.mod(j - kx, W) < W + pad - kx)
         for kx in range(KW)], axis=0).astype(jnp.bfloat16)             # (KW, Lh_pad)

    grid = (NB, T)
    comp = pltpu.CompilerParams(dimension_semantics=("parallel", "parallel"),
                                vmem_limit_bytes=budget)
    kern_kw = dict(KH=KH, KW=KW, W=W, Qt=Qt, Cin_p=Cin_p, Nb=Nb)
    staged_scratch = pltpu.VMEM((KH * KW * Cin_p, Nb * Qt), jnp.bfloat16)

    x_spec = pl.BlockSpec((1, Nb, Cin_p, Lh_pad), lambda nb, t: (nb * T + t, 0, 0, 0))
    w_spec = pl.BlockSpec((Cout, KH * KW * Cin_p), lambda nb, t: (0, 0))
    m_spec = pl.BlockSpec((KW, Lh_pad), lambda nb, t: (0, 0))

    # --- Pass 1: folded-tap conv -> per-channel sum / sum-of-squares only ------
    sums, sqs = pl.pallas_call(
        functools.partial(_conv_stats_kernel, **kern_kw),
        out_shape=(jax.ShapeDtypeStruct((NB * T, Cout, 1), jnp.float32),
                   jax.ShapeDtypeStruct((NB * T, Cout, 1), jnp.float32)),
        grid=grid,
        in_specs=[x_spec, w_spec, m_spec],
        out_specs=(pl.BlockSpec((1, Cout, 1), lambda nb, t: (nb * T + t, 0, 0)),
                   pl.BlockSpec((1, Cout, 1), lambda nb, t: (nb * T + t, 0, 0))),
        scratch_shapes=[staged_scratch],
        compiler_params=comp,
    )(xt, w_folded, masks)

    # --- Fold BN (training-mode batch statistics) into a per-channel affine ----
    # TODO(synk): E[x^2]-E[x]^2 in f32 is cancellation-prone for very large N*H*W
    # or large-magnitude activations; use a shifted/Welford reduction at scale.
    count = jnp.float32(N * Q)
    mean = jnp.sum(sums, axis=0).reshape(Cout) / count
    ex2 = jnp.sum(sqs, axis=0).reshape(Cout) / count
    var = jnp.maximum(ex2 - mean * mean, 0.0)
    inv_std = jax.lax.rsqrt(var + BN_EPS)
    scale = (bn_gamma * inv_std).astype(jnp.float32).reshape(Cout, 1)
    shift = (bn_beta - mean * bn_gamma * inv_std).astype(jnp.float32).reshape(Cout, 1)

    # --- Pass 2: recompute the folded-tap conv, apply affine + ReLU ------------
    out_flat = pl.pallas_call(
        functools.partial(_conv_bn_relu_kernel, **kern_kw),
        out_shape=jax.ShapeDtypeStruct((N, Cout, Q), jnp.float32),
        grid=grid,
        in_specs=[x_spec, w_spec, m_spec,
                  pl.BlockSpec((Cout, 1), lambda nb, t: (0, 0)),
                  pl.BlockSpec((Cout, 1), lambda nb, t: (0, 0))],
        out_specs=pl.BlockSpec((Nb, Cout, Qt), lambda nb, t: (nb, 0, t)),
        scratch_shapes=[staged_scratch],
        compiler_params=comp,
    )(xt, w_folded, masks, scale, shift)

    # NCHW output is a free metadata reshape -- no trailing transpose.
    return out_flat.reshape(N, Cout, H, W)


# ---------------------------------------------------------------------------
# Pure-JAX reference (the PyTorch module semantics, f32).
# ---------------------------------------------------------------------------
def reference_forward(x_nchw, conv_w, conv_b, bn_gamma, bn_beta):
    conv = jax.lax.conv_general_dilated(
        x_nchw, conv_w, window_strides=(1, 1), padding=((1, 1), (1, 1)),
        dimension_numbers=("NCHW", "OIHW", "NCHW"),
        precision=jax.lax.Precision.HIGHEST)
    conv = conv + conv_b[None, :, None, None]
    mean = jnp.mean(conv, axis=(0, 2, 3), keepdims=True)
    var = jnp.mean((conv - mean) ** 2, axis=(0, 2, 3), keepdims=True)
    y = (conv - mean) * jax.lax.rsqrt(var + BN_EPS)
    y = y * bn_gamma[None, :, None, None] + bn_beta[None, :, None, None]
    return jnp.maximum(y, 0.0)


if __name__ == "__main__":
    N, Cin, Cout, H, W = 2, 4, 8, 16, 16

    key = jax.random.PRNGKey(0)
    k1, k2, k3, k4, k5 = jax.random.split(key, 5)
    x = jax.random.normal(k1, (N, Cin, H, W), dtype=jnp.float32)
    conv_w = 0.1 * jax.random.normal(k2, (Cout, Cin, 3, 3), dtype=jnp.float32)
    conv_b = 0.1 * jax.random.normal(k3, (Cout,), dtype=jnp.float32)
    bn_gamma = 1.0 + 0.1 * jax.random.normal(k4, (Cout,), dtype=jnp.float32)
    bn_beta = 0.1 * jax.random.normal(k5, (Cout,), dtype=jnp.float32)

    # Default path: full image per tile, both images batched into one grid step.
    out = jax.block_until_ready(cnn_block_forward(x, conv_w, conv_b, bn_gamma, bn_beta))
    assert out.shape == (N, Cout, H, W)

    # Tight check: same math as the kernel (bf16-rounded conv operands, f32 elsewhere).
    x_q = x.astype(jnp.bfloat16).astype(jnp.float32)
    w_q = conv_w.astype(jnp.bfloat16).astype(jnp.float32)
    ref_q = reference_forward(x_q, w_q, conv_b, bn_gamma, bn_beta)
    assert jnp.allclose(out, ref_q, rtol=1e-3, atol=1e-3), "mismatch vs bf16-operand reference"

    # Loose check: full-f32 module semantics (difference is only the bf16 MXU operands).
    ref = reference_forward(x, conv_w, conv_b, bn_gamma, bn_beta)
    assert jnp.allclose(out, ref, rtol=3e-2, atol=3e-2), "mismatch vs f32 reference"

    # Also exercise the spatial-tiling path (2 tiles of 8 rows, one image per step).
    out_t = jax.block_until_ready(
        cnn_block_forward(x, conv_w, conv_b, bn_gamma, bn_beta,
                          rows_per_tile=8, images_per_step=1))
    assert out_t.shape == (N, Cout, H, W)
    assert jnp.allclose(out_t, ref_q, rtol=1e-3, atol=1e-3), "mismatch in Q-tiled path"

    print("KERNEL_OK")
</pallas_src>

<mosaic_0001>
module attributes {stable_mosaic.version = 11 : i64} {
  func.func @_conv_stats_kernel(%arg0: i32, %arg1: i32, %arg2: memref<1x2x8x384xbf16, #tpu.memory_space<vmem>>, %arg3: memref<8x72xbf16, #tpu.memory_space<vmem>>, %arg4: memref<3x384xbf16, #tpu.memory_space<vmem>>, %arg5: memref<1x8x1xf32, #tpu.memory_space<vmem>>, %arg6: memref<1x8x1xf32, #tpu.memory_space<vmem>>, %arg7: memref<72x512xbf16, #tpu.memory_space<vmem>>) attributes {dimension_semantics = [#tpu.dimension_semantics<parallel>, #tpu.dimension_semantics<parallel>], iteration_bounds = array<i64: 1, 1>, scalar_prefetch = 0 : i64, scratch_operands = 1 : i64, tpu.core_type = #tpu.core_type<tc>, window_params = [{transform_indices = @transform_0, window_bounds = array<i64: 1, 2, 8, 384>}, {pipeline_mode = #tpu.pipeline_mode<synchronous>, transform_indices = @transform_1, window_bounds = array<i64: 8, 72>}, {pipeline_mode = #tpu.pipeline_mode<synchronous>, transform_indices = @transform_2, window_bounds = array<i64: 3, 384>}, {transform_indices = @transform_3, window_bounds = array<i64: 1, 8, 1>}, {transform_indices = @transform_4, window_bounds = array<i64: 1, 8, 1>}]} {
    %c0 = arith.constant 0 : index
    %c0_0 = arith.constant 0 : index
    %c0_1 = arith.constant 0 : index
    %c0_2 = arith.constant 0 : index
    %0 = vector.load %arg2[%c0, %c0_0, %c0_1, %c0_2] : memref<1x2x8x384xbf16, #tpu.memory_space<vmem>>, vector<1x1x8x384xbf16>
    %1 = vector.shape_cast %0 : vector<1x1x8x384xbf16> to vector<8x384xbf16>
    %c0_3 = arith.constant 0 : index
    %c0_4 = arith.constant 0 : index
    %2 = vector.load %arg4[%c0_3, %c0_4] : memref<3x384xbf16, #tpu.memory_space<vmem>>, vector<1x384xbf16>
    %3 = vector.broadcast %2 : vector<1x384xbf16> to vector<8x384xbf16>
    %4 = arith.mulf %1, %3 : vector<8x384xbf16>
    %c2 = arith.constant 2 : index
    %c0_5 = arith.constant 0 : index
    %5 = vector.load %arg4[%c2, %c0_5] : memref<3x384xbf16, #tpu.memory_space<vmem>>, vector<1x384xbf16>
    %6 = vector.broadcast %5 : vector<1x384xbf16> to vector<8x384xbf16>
    %7 = arith.mulf %1, %6 : vector<8x384xbf16>
    %8 = vector.extract_strided_slice %4 {offsets = [0, 0], sizes = [8, 256], strides = [1, 1]} : vector<8x384xbf16> to vector<8x256xbf16>
    %c0_6 = arith.constant 0 : index
    %c0_7 = arith.constant 0 : index
    %9 = vector.load %arg7[%c0_6, %c0_7] : memref<72x512xbf16, #tpu.memory_space<vmem>>, vector<8x256xbf16>
    tpu.vector_store %arg7[%c0_6, %c0_7], %8 {strides = array<i32>} : memref<72x512xbf16, #tpu.memory_space<vmem>>, vector<8x256xbf16>,
    %10 = vector.extract_strided_slice %1 {offsets = [0, 1], sizes = [8, 256], strides = [1, 1]} : vector<8x384xbf16> to vector<8x256xbf16>
    %c8 = arith.constant 8 : index
    %c0_8 = arith.constant 0 : index
    %11 = vector.load %arg7[%c8, %c0_8] : memref<72x512xbf16, #tpu.memory_space<vmem>>, vector<8x256xbf16>
    tpu.vector_store %arg7[%c8, %c0_8], %10 {strides = array<i32>} : memref<72x512xbf16, #tpu.memory_space<vmem>>, vector<8x256xbf16>,
    %12 = vector.extract_strided_slice %7 {offsets = [0, 2], sizes = [8, 256], strides = [1, 1]} : vector<8x384xbf16> to vector<8x256xbf16>
    %c16 = arith.constant 16 : index
    %c0_9 = arith.constant 0 : index
    %13 = vector.load %arg7[%c16, %c0_9] : memref<72x512xbf16, #tpu.memory_space<vmem>>, vector<8x256xbf16>
    tpu.vector_store %arg7[%c16, %c0_9], %12 {strides = array<i32>} : memref<72x512xbf16, #tpu.memory_space<vmem>>, vector<8x256xbf16>,
    %14 = vector.extract_strided_slice %4 {offsets = [0, 16], sizes = [8, 256], strides = [1, 1]} : vector<8x384xbf16> to vector<8x256xbf16>
    %c24 = arith.constant 24 : index
    %c0_10 = arith.constant 0 : index
    %15 = vector.load %arg7[%c24, %c0_10] : memref<72x512xbf16, #tpu.memory_space<vmem>>, vector<8x256xbf16>
    tpu.vector_store %arg7[%c24, %c0_10], %14 {strides = array<i32>} : memref<72x512xbf16, #tpu.memory_space<vmem>>, vector<8x256xbf16>,
    %16 = vector.extract_strided_slice %1 {offsets = [0, 17], sizes = [8, 256], strides = [1, 1]} : vector<8x384xbf16> to vector<8x256xbf16>
    %c32 = arith.constant 32 : index
    %c0_11 = arith.constant 0 : index
    %17 = vector.load %arg7[%c32, %c0_11] : memref<72x512xbf16, #tpu.memory_space<vmem>>, vector<8x256xbf16>
    tpu.vector_store %arg7[%c32, %c0_11], %16 {strides = array<i32>} : memref<72x512xbf16, #tpu.memory_space<vmem>>, vector<8x256xbf16>,
    %18 = vector.extract_strided_slice %7 {offsets = [0, 18], sizes = [8, 256], strides = [1, 1]} : vector<8x384xbf16> to vector<8x256xbf16>
    %c40 = arith.constant 40 : index
    %c0_12 = arith.constant 0 : index
    %19 = vector.load %arg7[%c40, %c0_12] : memref<72x512xbf16, #tpu.memory_space<vmem>>, vector<8x256xbf16>
    tpu.vector_store %arg7[%c40, %c0_12], %18 {strides = array<i32>} : memref<72x512xbf16, #tpu.memory_space<vmem>>, vector<8x256xbf16>,
    %20 = vector.extract_strided_slice %4 {offsets = [0, 32], sizes = [8, 256], strides = [1, 1]} : vector<8x384xbf16> to vector<8x256xbf16>
    %c48 = arith.constant 48 : index
    %c0_13 = arith.constant 0 : index
    %21 = vector.load %arg7[%c48, %c0_13] : memref<72x512xbf16, #tpu.memory_space<vmem>>, vector<8x256xbf16>
    tpu.vector_store %arg7[%c48, %c0_13], %20 {strides = array<i32>} : memref<72x512xbf16, #tpu.memory_space<vmem>>, vector<8x256xbf16>,
    %22 = vector.extract_strided_slice %1 {offsets = [0, 33], sizes = [8, 256], strides = [1, 1]} : vector<8x384xbf16> to vector<8x256xbf16>
    %c56 = arith.constant 56 : index
    %c0_14 = arith.constant 0 : index
    %23 = vector.load %arg7[%c56, %c0_14] : memref<72x512xbf16, #tpu.memory_space<vmem>>, vector<8x256xbf16>
    tpu.vector_store %arg7[%c56, %c0_14], %22 {strides = array<i32>} : memref<72x512xbf16, #tpu.memory_space<vmem>>, vector<8x256xbf16>,
    %24 = vector.extract_strided_slice %7 {offsets = [0, 34], sizes = [8, 256], strides = [1, 1]} : vector<8x384xbf16> to vector<8x256xbf16>
    %c64 = arith.constant 64 : index
    %c0_15 = arith.constant 0 : index
    %25 = vector.load %arg7[%c64, %c0_15] : memref<72x512xbf16, #tpu.memory_space<vmem>>, vector<8x256xbf16>
    tpu.vector_store %arg7[%c64, %c0_15], %24 {strides = array<i32>} : memref<72x512xbf16, #tpu.memory_space<vmem>>, vector<8x256xbf16>,
    %c0_16 = arith.constant 0 : index
    %c1 = arith.constant 1 : index
    %c0_17 = arith.constant 0 : index
    %c0_18 = arith.constant 0 : index
    %26 = vector.load %arg2[%c0_16, %c1, %c0_17, %c0_18] : memref<1x2x8x384xbf16, #tpu.memory_space<vmem>>, vector<1x1x8x384xbf16>
    %27 = vector.shape_cast %26 : vector<1x1x8x384xbf16> to vector<8x384xbf16>
    %c0_19 = arith.constant 0 : index
    %c0_20 = arith.constant 0 : index
    %28 = vector.load %arg4[%c0_19, %c0_20] : memref<3x384xbf16, #tpu.memory_space<vmem>>, vector<1x384xbf16>
    %29 = vector.broadcast %28 : vector<1x384xbf16> to vector<8x384xbf16>
    %30 = arith.mulf %27, %29 : vector<8x384xbf16>
    %c2_21 = arith.constant 2 : index
    %c0_22 = arith.constant 0 : index
    %31 = vector.load %arg4[%c2_21, %c0_22] : memref<3x384xbf16, #tpu.memory_space<vmem>>, vector<1x384xbf16>
    %32 = vector.broadcast %31 : vector<1x384xbf16> to vector<8x384xbf16>
    %33 = arith.mulf %27, %32 : vector<8x384xbf16>
    %34 = vector.extract_strided_slice %30 {offsets = [0, 0], sizes = [8, 256], strides = [1, 1]} : vector<8x384xbf16> to vector<8x256xbf16>
    %c0_23 = arith.constant 0 : index
    %c256 = arith.constant 256 : index
    %35 = vector.load %arg7[%c0_23, %c256] : memref<72x512xbf16, #tpu.memory_space<vmem>>, vector<8x256xbf16>
    tpu.vector_store %arg7[%c0_23, %c256], %34 {strides = array<i32>} : memref<72x512xbf16, #tpu.memory_space<vmem>>, vector<8x256xbf16>,
    %36 = vector.extract_strided_slice %27 {offsets = [0, 1], sizes = [8, 256], strides = [1, 1]} : vector<8x384xbf16> to vector<8x256xbf16>
    %c8_24 = arith.constant 8 : index
    %c256_25 = arith.constant 256 : index
    %37 = vector.load %arg7[%c8_24, %c256_25] : memref<72x512xbf16, #tpu.memory_space<vmem>>, vector<8x256xbf16>
    tpu.vector_store %arg7[%c8_24, %c256_25], %36 {strides = array<i32>} : memref<72x512xbf16, #tpu.memory_space<vmem>>, vector<8x256xbf16>,
    %38 = vector.extract_strided_slice %33 {offsets = [0, 2], sizes = [8, 256], strides = [1, 1]} : vector<8x384xbf16> to vector<8x256xbf16>
    %c16_26 = arith.constant 16 : index
    %c256_27 = arith.constant 256 : index
    %39 = vector.load %arg7[%c16_26, %c256_27] : memref<72x512xbf16, #tpu.memory_space<vmem>>, vector<8x256xbf16>
    tpu.vector_store %arg7[%c16_26, %c256_27], %38 {strides = array<i32>} : memref<72x512xbf16, #tpu.memory_space<vmem>>, vector<8x256xbf16>,
    %40 = vector.extract_strided_slice %30 {offsets = [0, 16], sizes = [8, 256], strides = [1, 1]} : vector<8x384xbf16> to vector<8x256xbf16>
    %c24_28 = arith.constant 24 : index
    %c256_29 = arith.constant 256 : index
    %41 = vector.load %arg7[%c24_28, %c256_29] : memref<72x512xbf16, #tpu.memory_space<vmem>>, vector<8x256xbf16>
    tpu.vector_store %arg7[%c24_28, %c256_29], %40 {strides = array<i32>} : memref<72x512xbf16, #tpu.memory_space<vmem>>, vector<8x256xbf16>,
    %42 = vector.extract_strided_slice %27 {offsets = [0, 17], sizes = [8, 256], strides = [1, 1]} : vector<8x384xbf16> to vector<8x256xbf16>
    %c32_30 = arith.constant 32 : index
    %c256_31 = arith.constant 256 : index
    %43 = vector.load %arg7[%c32_30, %c256_31] : memref<72x512xbf16, #tpu.memory_space<vmem>>, vector<8x256xbf16>
    tpu.vector_store %arg7[%c32_30, %c256_31], %42 {strides = array<i32>} : memref<72x512xbf16, #tpu.memory_space<vmem>>, vector<8x256xbf16>,
    %44 = vector.extract_strided_slice %33 {offsets = [0, 18], sizes = [8, 256], strides = [1, 1]} : vector<8x384xbf16> to vector<8x256xbf16>
    %c40_32 = arith.constant 40 : index
    %c256_33 = arith.constant 256 : index
    %45 = vector.load %arg7[%c40_32, %c256_33] : memref<72x512xbf16, #tpu.memory_space<vmem>>, vector<8x256xbf16>
    tpu.vector_store %arg7[%c40_32, %c256_33], %44 {strides = array<i32>} : memref<72x512xbf16, #tpu.memory_space<vmem>>, vector<8x256xbf16>,
    %46 = vector.extract_strided_slice %30 {offsets = [0, 32], sizes = [8, 256], strides = [1, 1]} : vector<8x384xbf16> to vector<8x256xbf16>
    %c48_34 = arith.constant 48 : index
    %c256_35 = arith.constant 256 : index
    %47 = vector.load %arg7[%c48_34, %c256_35] : memref<72x512xbf16, #tpu.memory_space<vmem>>, vector<8x256xbf16>
    tpu.vector_store %arg7[%c48_34, %c256_35], %46 {strides = array<i32>} : memref<72x512xbf16, #tpu.memory_space<vmem>>, vector<8x256xbf16>,
    %48 = vector.extract_strided_slice %27 {offsets = [0, 33], sizes = [8, 256], strides = [1, 1]} : vector<8x384xbf16> to vector<8x256xbf16>
    %c56_36 = arith.constant 56 : index
    %c256_37 = arith.constant 256 : index
    %49 = vector.load %arg7[%c56_36, %c256_37] : memref<72x512xbf16, #tpu.memory_space<vmem>>, vector<8x256xbf16>
    tpu.vector_store %arg7[%c56_36, %c256_37], %48 {strides = array<i32>} : memref<72x512xbf16, #tpu.memory_space<vmem>>, vector<8x256xbf16>,
    %50 = vector.extract_strided_slice %33 {offsets = [0, 34], sizes = [8, 256], strides = [1, 1]} : vector<8x384xbf16> to vector<8x256xbf16>
    %c64_38 = arith.constant 64 : index
    %c256_39 = arith.constant 256 : index
    %51 = vector.load %arg7[%c64_38, %c256_39] : memref<72x512xbf16, #tpu.memory_space<vmem>>, vector<8x256xbf16>
    tpu.vector_store %arg7[%c64_38, %c256_39], %50 {strides = array<i32>} : memref<72x512xbf16, #tpu.memory_space<vmem>>, vector<8x256xbf16>,
    %c0_40 = arith.constant 0 : index
    %c0_41 = arith.constant 0 : index
    %52 = vector.load %arg3[%c0_40, %c0_41] : memref<8x72xbf16, #tpu.memory_space<vmem>>, vector<8x72xbf16>
    %c0_42 = arith.constant 0 : index
    %c0_43 = arith.constant 0 : index
    %53 = vector.load %arg7[%c0_42, %c0_43] : memref<72x512xbf16, #tpu.memory_space<vmem>>, vector<72x512xbf16>
    %cst = arith.constant dense<0.000000e+00> : vector<8x512xf32>
    %54 = tpu.matmul %52, %53, %cst {dimension_numbers = #tpu.dot_dimension_numbers<[1], [0], [0], [1], [0, 0, 1, 1], [], []>} : vector<8x72xbf16>, vector<72x512xbf16>, vector<8x512xf32> -> vector<8x512xf32>
    %cst_44 = arith.constant dense<0.000000e+00> : vector<8xf32>
    %55 = vector.multi_reduction <add>, %54, %cst_44 [1] : vector<8x512xf32> to vector<8xf32>
    %56 = vector.shape_cast %55 : vector<8xf32> to vector<8x1xf32>
    %c0_45 = arith.constant 0 : index
    %c0_46 = arith.constant 0 : index
    %c0_47 = arith.constant 0 : index
    %57 = vector.load %arg5[%c0_45, %c0_46, %c0_47] : memref<1x8x1xf32, #tpu.memory_space<vmem>>, vector<1x8x1xf32>
    %58 = vector.shape_cast %57 : vector<1x8x1xf32> to vector<8x1xf32>
    %59 = vector.shape_cast %56 : vector<8x1xf32> to vector<1x8x1xf32>
    tpu.vector_store %arg5[%c0_45, %c0_46, %c0_47], %59 {strides = array<i32>} : memref<1x8x1xf32, #tpu.memory_space<vmem>>, vector<1x8x1xf32>,
    %60 = arith.mulf %54, %54 : vector<8x512xf32>
    %cst_48 = arith.constant dense<0.000000e+00> : vector<8xf32>
    %61 = vector.multi_reduction <add>, %60, %cst_48 [1] : vector<8x512xf32> to vector<8xf32>
    %62 = vector.shape_cast %61 : vector<8xf32> to vector<8x1xf32>
    %c0_49 = arith.constant 0 : index
    %c0_50 = arith.constant 0 : index
    %c0_51 = arith.constant 0 : index
    %63 = vector.load %arg6[%c0_49, %c0_50, %c0_51] : memref<1x8x1xf32, #tpu.memory_space<vmem>>, vector<1x8x1xf32>
    %64 = vector.shape_cast %63 : vector<1x8x1xf32> to vector<8x1xf32>
    %65 = vector.shape_cast %62 : vector<8x1xf32> to vector<1x8x1xf32>
    tpu.vector_store %arg6[%c0_49, %c0_50, %c0_51], %65 {strides = array<i32>} : memref<1x8x1xf32, #tpu.memory_space<vmem>>, vector<1x8x1xf32>,
    return
  }
  func.func @transform_0(%arg0: i32, %arg1: i32) -> (i32, i32, i32, i32) {
    %c1_i32 = arith.constant 1 : i32
    %0 = arith.muli %arg0, %c1_i32 : i32
    %1 = arith.addi %0, %arg1 : i32
    %c0_i32 = arith.constant 0 : i32
    %c0_i32_0 = arith.constant 0 : i32
    %c0_i32_1 = arith.constant 0 : i32
    %c0_i32_2 = arith.constant 0 : i32
    return %1, %c0_i32, %c0_i32_0, %c0_i32_1 : i32, i32, i32, i32
  }
  func.func @transform_1(%arg0: i32, %arg1: i32) -> (i32, i32) {
    %c0_i32 = arith.constant 0 : i32
    %c0_i32_0 = arith.constant 0 : i32
    %c0_i32_1 = arith.constant 0 : i32
    return %c0_i32, %c0_i32_0 : i32, i32
  }
  func.func @transform_2(%arg0: i32, %arg1: i32) -> (i32, i32) {
    %c0_i32 = arith.constant 0 : i32
    %c0_i32_0 = arith.constant 0 : i32
    %c0_i32_1 = arith.constant 0 : i32
    return %c0_i32, %c0_i32_0 : i32, i32
  }
  func.func @transform_3(%arg0: i32, %arg1: i32) -> (i32, i32, i32) {
    %c1_i32 = arith.constant 1 : i32
    %0 = arith.muli %arg0, %c1_i32 : i32
    %1 = arith.addi %0, %arg1 : i32
    %c0_i32 = arith.constant 0 : i32
    %c0_i32_0 = arith.constant 0 : i32
    %c0_i32_1 = arith.constant 0 : i32
    return %1, %c0_i32, %c0_i32_0 : i32, i32, i32
  }
  func.func @transform_4(%arg0: i32, %arg1: i32) -> (i32, i32, i32) {
    %c1_i32 = arith.constant 1 : i32
    %0 = arith.muli %arg0, %c1_i32 : i32
    %1 = arith.addi %0, %arg1 : i32
    %c0_i32 = arith.constant 0 : i32
    %c0_i32_0 = arith.constant 0 : i32
    %c0_i32_1 = arith.constant 0 : i32
    return %1, %c0_i32, %c0_i32_0 : i32, i32, i32
  }
}

module attributes {stable_mosaic.version = 11 : i64} {
  func.func @_conv_bn_relu_kernel(%arg0: i32, %arg1: i32, %arg2: memref<1x2x8x384xbf16, #tpu.memory_space<vmem>>, %arg3: memref<8x72xbf16, #tpu.memory_space<vmem>>, %arg4: memref<3x384xbf16, #tpu.memory_space<vmem>>, %arg5: memref<8x1xf32, #tpu.memory_space<vmem>>, %arg6: memref<8x1xf32, #tpu.memory_space<vmem>>, %arg7: memref<2x8x256xf32, #tpu.memory_space<vmem>>, %arg8: memref<72x512xbf16, #tpu.memory_space<vmem>>) attributes {dimension_semantics = [#tpu.dimension_semantics<parallel>, #tpu.dimension_semantics<parallel>], iteration_bounds = array<i64: 1, 1>, scalar_prefetch = 0 : i64, scratch_operands = 1 : i64, tpu.core_type = #tpu.core_type<tc>, window_params = [{transform_indices = @transform_0, window_bounds = array<i64: 1, 2, 8, 384>}, {pipeline_mode = #tpu.pipeline_mode<synchronous>, transform_indices = @transform_1, window_bounds = array<i64: 8, 72>}, {pipeline_mode = #tpu.pipeline_mode<synchronous>, transform_indices = @transform_2, window_bounds = array<i64: 3, 384>}, {pipeline_mode = #tpu.pipeline_mode<synchronous>, transform_indices = @transform_3, window_bounds = array<i64: 8, 1>}, {pipeline_mode = #tpu.pipeline_mode<synchronous>, transform_indices = @transform_4, window_bounds = array<i64: 8, 1>}, {transform_indices = @transform_5, window_bounds = array<i64: 2, 8, 256>}]} {
    %c0 = arith.constant 0 : index
    %c0_0 = arith.constant 0 : index
    %c0_1 = arith.constant 0 : index
    %c0_2 = arith.constant 0 : index
    %0 = vector.load %arg2[%c0, %c0_0, %c0_1, %c0_2] : memref<1x2x8x384xbf16, #tpu.memory_space<vmem>>, vector<1x1x8x384xbf16>
    %1 = vector.shape_cast %0 : vector<1x1x8x384xbf16> to vector<8x384xbf16>
    %c0_3 = arith.constant 0 : index
    %c0_4 = arith.constant 0 : index
    %2 = vector.load %arg4[%c0_3, %c0_4] : memref<3x384xbf16, #tpu.memory_space<vmem>>, vector<1x384xbf16>
    %3 = vector.broadcast %2 : vector<1x384xbf16> to vector<8x384xbf16>
    %4 = arith.mulf %1, %3 : vector<8x384xbf16>
    %c2 = arith.constant 2 : index
    %c0_5 = arith.constant 0 : index
    %5 = vector.load %arg4[%c2, %c0_5] : memref<3x384xbf16, #tpu.memory_space<vmem>>, vector<1x384xbf16>
    %6 = vector.broadcast %5 : vector<1x384xbf16> to vector<8x384xbf16>
    %7 = arith.mulf %1, %6 : vector<8x384xbf16>
    %8 = vector.extract_strided_slice %4 {offsets = [0, 0], sizes = [8, 256], strides = [1, 1]} : vector<8x384xbf16> to vector<8x256xbf16>
    %c0_6 = arith.constant 0 : index
    %c0_7 = arith.constant 0 : index
    %9 = vector.load %arg8[%c0_6, %c0_7] : memref<72x512xbf16, #tpu.memory_space<vmem>>, vector<8x256xbf16>
    tpu.vector_store %arg8[%c0_6, %c0_7], %8 {strides = array<i32>} : memref<72x512xbf16, #tpu.memory_space<vmem>>, vector<8x256xbf16>,
    %10 = vector.extract_strided_slice %1 {offsets = [0, 1], sizes = [8, 256], strides = [1, 1]} : vector<8x384xbf16> to vector<8x256xbf16>
    %c8 = arith.constant 8 : index
    %c0_8 = arith.constant 0 : index
    %11 = vector.load %arg8[%c8, %c0_8] : memref<72x512xbf16, #tpu.memory_space<vmem>>, vector<8x256xbf16>
    tpu.vector_store %arg8[%c8, %c0_8], %10 {strides = array<i32>} : memref<72x512xbf16, #tpu.memory_space<vmem>>, vector<8x256xbf16>,
    %12 = vector.extract_strided_slice %7 {offsets = [0, 2], sizes = [8, 256], strides = [1, 1]} : vector<8x384xbf16> to vector<8x256xbf16>
    %c16 = arith.constant 16 : index
    %c0_9 = arith.constant 0 : index
    %13 = vector.load %arg8[%c16, %c0_9] : memref<72x512xbf16, #tpu.memory_space<vmem>>, vector<8x256xbf16>
    tpu.vector_store %arg8[%c16, %c0_9], %12 {strides = array<i32>} : memref<72x512xbf16, #tpu.memory_space<vmem>>, vector<8x256xbf16>,
    %14 = vector.extract_strided_slice %4 {offsets = [0, 16], sizes = [8, 256], strides = [1, 1]} : vector<8x384xbf16> to vector<8x256xbf16>
    %c24 = arith.constant 24 : index
    %c0_10 = arith.constant 0 : index
    %15 = vector.load %arg8[%c24, %c0_10] : memref<72x512xbf16, #tpu.memory_space<vmem>>, vector<8x256xbf16>
    tpu.vector_store %arg8[%c24, %c0_10], %14 {strides = array<i32>} : memref<72x512xbf16, #tpu.memory_space<vmem>>, vector<8x256xbf16>,
    %16 = vector.extract_strided_slice %1 {offsets = [0, 17], sizes = [8, 256], strides = [1, 1]} : vector<8x384xbf16> to vector<8x256xbf16>
    %c32 = arith.constant 32 : index
    %c0_11 = arith.constant 0 : index
    %17 = vector.load %arg8[%c32, %c0_11] : memref<72x512xbf16, #tpu.memory_space<vmem>>, vector<8x256xbf16>
    tpu.vector_store %arg8[%c32, %c0_11], %16 {strides = array<i32>} : memref<72x512xbf16, #tpu.memory_space<vmem>>, vector<8x256xbf16>,
    %18 = vector.extract_strided_slice %7 {offsets = [0, 18], sizes = [8, 256], strides = [1, 1]} : vector<8x384xbf16> to vector<8x256xbf16>
    %c40 = arith.constant 40 : index
    %c0_12 = arith.constant 0 : index
    %19 = vector.load %arg8[%c40, %c0_12] : memref<72x512xbf16, #tpu.memory_space<vmem>>, vector<8x256xbf16>
    tpu.vector_store %arg8[%c40, %c0_12], %18 {strides = array<i32>} : memref<72x512xbf16, #tpu.memory_space<vmem>>, vector<8x256xbf16>,
    %20 = vector.extract_strided_slice %4 {offsets = [0, 32], sizes = [8, 256], strides = [1, 1]} : vector<8x384xbf16> to vector<8x256xbf16>
    %c48 = arith.constant 48 : index
    %c0_13 = arith.constant 0 : index
    %21 = vector.load %arg8[%c48, %c0_13] : memref<72x512xbf16, #tpu.memory_space<vmem>>, vector<8x256xbf16>
    tpu.vector_store %arg8[%c48, %c0_13], %20 {strides = array<i32>} : memref<72x512xbf16, #tpu.memory_space<vmem>>, vector<8x256xbf16>,
    %22 = vector.extract_strided_slice %1 {offsets = [0, 33], sizes = [8, 256], strides = [1, 1]} : vector<8x384xbf16> to vector<8x256xbf16>
    %c56 = arith.constant 56 : index
    %c0_14 = arith.constant 0 : index
    %23 = vector.load %arg8[%c56, %c0_14] : memref<72x512xbf16, #tpu.memory_space<vmem>>, vector<8x256xbf16>
    tpu.vector_store %arg8[%c56, %c0_14], %22 {strides = array<i32>} : memref<72x512xbf16, #tpu.memory_space<vmem>>, vector<8x256xbf16>,
    %24 = vector.extract_strided_slice %7 {offsets = [0, 34], sizes = [8, 256], strides = [1, 1]} : vector<8x384xbf16> to vector<8x256xbf16>
    %c64 = arith.constant 64 : index
    %c0_15 = arith.constant 0 : index
    %25 = vector.load %arg8[%c64, %c0_15] : memref<72x512xbf16, #tpu.memory_space<vmem>>, vector<8x256xbf16>
    tpu.vector_store %arg8[%c64, %c0_15], %24 {strides = array<i32>} : memref<72x512xbf16, #tpu.memory_space<vmem>>, vector<8x256xbf16>,
    %c0_16 = arith.constant 0 : index
    %c1 = arith.constant 1 : index
    %c0_17 = arith.constant 0 : index
    %c0_18 = arith.constant 0 : index
    %26 = vector.load %arg2[%c0_16, %c1, %c0_17, %c0_18] : memref<1x2x8x384xbf16, #tpu.memory_space<vmem>>, vector<1x1x8x384xbf16>
    %27 = vector.shape_cast %26 : vector<1x1x8x384xbf16> to vector<8x384xbf16>
    %c0_19 = arith.constant 0 : index
    %c0_20 = arith.constant 0 : index
    %28 = vector.load %arg4[%c0_19, %c0_20] : memref<3x384xbf16, #tpu.memory_space<vmem>>, vector<1x384xbf16>
    %29 = vector.broadcast %28 : vector<1x384xbf16> to vector<8x384xbf16>
    %30 = arith.mulf %27, %29 : vector<8x384xbf16>
    %c2_21 = arith.constant 2 : index
    %c0_22 = arith.constant 0 : index
    %31 = vector.load %arg4[%c2_21, %c0_22] : memref<3x384xbf16, #tpu.memory_space<vmem>>, vector<1x384xbf16>
    %32 = vector.broadcast %31 : vector<1x384xbf16> to vector<8x384xbf16>
    %33 = arith.mulf %27, %32 : vector<8x384xbf16>
    %34 = vector.extract_strided_slice %30 {offsets = [0, 0], sizes = [8, 256], strides = [1, 1]} : vector<8x384xbf16> to vector<8x256xbf16>
    %c0_23 = arith.constant 0 : index
    %c256 = arith.constant 256 : index
    %35 = vector.load %arg8[%c0_23, %c256] : memref<72x512xbf16, #tpu.memory_space<vmem>>, vector<8x256xbf16>
    tpu.vector_store %arg8[%c0_23, %c256], %34 {strides = array<i32>} : memref<72x512xbf16, #tpu.memory_space<vmem>>, vector<8x256xbf16>,
    %36 = vector.extract_strided_slice %27 {offsets = [0, 1], sizes = [8, 256], strides = [1, 1]} : vector<8x384xbf16> to vector<8x256xbf16>
    %c8_24 = arith.constant 8 : index
    %c256_25 = arith.constant 256 : index
    %37 = vector.load %arg8[%c8_24, %c256_25] : memref<72x512xbf16, #tpu.memory_space<vmem>>, vector<8x256xbf16>
    tpu.vector_store %arg8[%c8_24, %c256_25], %36 {strides = array<i32>} : memref<72x512xbf16, #tpu.memory_space<vmem>>, vector<8x256xbf16>,
    %38 = vector.extract_strided_slice %33 {offsets = [0, 2], sizes = [8, 256], strides = [1, 1]} : vector<8x384xbf16> to vector<8x256xbf16>
    %c16_26 = arith.constant 16 : index
    %c256_27 = arith.constant 256 : index
    %39 = vector.load %arg8[%c16_26, %c256_27] : memref<72x512xbf16, #tpu.memory_space<vmem>>, vector<8x256xbf16>
    tpu.vector_store %arg8[%c16_26, %c256_27], %38 {strides = array<i32>} : memref<72x512xbf16, #tpu.memory_space<vmem>>, vector<8x256xbf16>,
    %40 = vector.extract_strided_slice %30 {offsets = [0, 16], sizes = [8, 256], strides = [1, 1]} : vector<8x384xbf16> to vector<8x256xbf16>
    %c24_28 = arith.constant 24 : index
    %c256_29 = arith.constant 256 : index
    %41 = vector.load %arg8[%c24_28, %c256_29] : memref<72x512xbf16, #tpu.memory_space<vmem>>, vector<8x256xbf16>
    tpu.vector_store %arg8[%c24_28, %c256_29], %40 {strides = array<i32>} : memref<72x512xbf16, #tpu.memory_space<vmem>>, vector<8x256xbf16>,
    %42 = vector.extract_strided_slice %27 {offsets = [0, 17], sizes = [8, 256], strides = [1, 1]} : vector<8x384xbf16> to vector<8x256xbf16>
    %c32_30 = arith.constant 32 : index
    %c256_31 = arith.constant 256 : index
    %43 = vector.load %arg8[%c32_30, %c256_31] : memref<72x512xbf16, #tpu.memory_space<vmem>>, vector<8x256xbf16>
    tpu.vector_store %arg8[%c32_30, %c256_31], %42 {strides = array<i32>} : memref<72x512xbf16, #tpu.memory_space<vmem>>, vector<8x256xbf16>,
    %44 = vector.extract_strided_slice %33 {offsets = [0, 18], sizes = [8, 256], strides = [1, 1]} : vector<8x384xbf16> to vector<8x256xbf16>
    %c40_32 = arith.constant 40 : index
    %c256_33 = arith.constant 256 : index
    %45 = vector.load %arg8[%c40_32, %c256_33] : memref<72x512xbf16, #tpu.memory_space<vmem>>, vector<8x256xbf16>
    tpu.vector_store %arg8[%c40_32, %c256_33], %44 {strides = array<i32>} : memref<72x512xbf16, #tpu.memory_space<vmem>>, vector<8x256xbf16>,
    %46 = vector.extract_strided_slice %30 {offsets = [0, 32], sizes = [8, 256], strides = [1, 1]} : vector<8x384xbf16> to vector<8x256xbf16>
    %c48_34 = arith.constant 48 : index
    %c256_35 = arith.constant 256 : index
    %47 = vector.load %arg8[%c48_34, %c256_35] : memref<72x512xbf16, #tpu.memory_space<vmem>>, vector<8x256xbf16>
    tpu.vector_store %arg8[%c48_34, %c256_35], %46 {strides = array<i32>} : memref<72x512xbf16, #tpu.memory_space<vmem>>, vector<8x256xbf16>,
    %48 = vector.extract_strided_slice %27 {offsets = [0, 33], sizes = [8, 256], strides = [1, 1]} : vector<8x384xbf16> to vector<8x256xbf16>
    %c56_36 = arith.constant 56 : index
    %c256_37 = arith.constant 256 : index
    %49 = vector.load %arg8[%c56_36, %c256_37] : memref<72x512xbf16, #tpu.memory_space<vmem>>, vector<8x256xbf16>
    tpu.vector_store %arg8[%c56_36, %c256_37], %48 {strides = array<i32>} : memref<72x512xbf16, #tpu.memory_space<vmem>>, vector<8x256xbf16>,
    %50 = vector.extract_strided_slice %33 {offsets = [0, 34], sizes = [8, 256], strides = [1, 1]} : vector<8x384xbf16> to vector<8x256xbf16>
    %c64_38 = arith.constant 64 : index
    %c256_39 = arith.constant 256 : index
    %51 = vector.load %arg8[%c64_38, %c256_39] : memref<72x512xbf16, #tpu.memory_space<vmem>>, vector<8x256xbf16>
    tpu.vector_store %arg8[%c64_38, %c256_39], %50 {strides = array<i32>} : memref<72x512xbf16, #tpu.memory_space<vmem>>, vector<8x256xbf16>,
    %c0_40 = arith.constant 0 : index
    %c0_41 = arith.constant 0 : index
    %52 = vector.load %arg3[%c0_40, %c0_41] : memref<8x72xbf16, #tpu.memory_space<vmem>>, vector<8x72xbf16>
    %c0_42 = arith.constant 0 : index
    %c0_43 = arith.constant 0 : index
    %53 = vector.load %arg8[%c0_42, %c0_43] : memref<72x512xbf16, #tpu.memory_space<vmem>>, vector<72x512xbf16>
    %cst = arith.constant dense<0.000000e+00> : vector<8x512xf32>
    %54 = tpu.matmul %52, %53, %cst {dimension_numbers = #tpu.dot_dimension_numbers<[1], [0], [0], [1], [0, 0, 1, 1], [], []>} : vector<8x72xbf16>, vector<72x512xbf16>, vector<8x512xf32> -> vector<8x512xf32>
    %c0_44 = arith.constant 0 : index
    %c0_45 = arith.constant 0 : index
    %55 = vector.load %arg5[%c0_44, %c0_45] : memref<8x1xf32, #tpu.memory_space<vmem>>, vector<8x1xf32>
    %56 = vector.broadcast %55 : vector<8x1xf32> to vector<8x512xf32>
    %57 = arith.mulf %54, %56 : vector<8x512xf32>
    %c0_46 = arith.constant 0 : index
    %c0_47 = arith.constant 0 : index
    %58 = vector.load %arg6[%c0_46, %c0_47] : memref<8x1xf32, #tpu.memory_space<vmem>>, vector<8x1xf32>
    %59 = vector.broadcast %58 : vector<8x1xf32> to vector<8x512xf32>
    %60 = arith.addf %57, %59 : vector<8x512xf32>
    %cst_48 = arith.constant 0.000000e+00 : f32
    %61 = vector.broadcast %cst_48 : f32 to vector<8x512xf32>
    %62 = arith.maximumf %60, %61 : vector<8x512xf32>
    %63 = vector.extract_strided_slice %62 {offsets = [0, 0], sizes = [8, 256], strides = [1, 1]} : vector<8x512xf32> to vector<8x256xf32>
    %c0_49 = arith.constant 0 : index
    %c0_50 = arith.constant 0 : index
    %c0_51 = arith.constant 0 : index
    %64 = vector.load %arg7[%c0_49, %c0_50, %c0_51] : memref<2x8x256xf32, #tpu.memory_space<vmem>>, vector<1x8x256xf32>
    %65 = vector.shape_cast %64 : vector<1x8x256xf32> to vector<8x256xf32>
    %66 = vector.shape_cast %63 : vector<8x256xf32> to vector<1x8x256xf32>
    tpu.vector_store %arg7[%c0_49, %c0_50, %c0_51], %66 {strides = array<i32>} : memref<2x8x256xf32, #tpu.memory_space<vmem>>, vector<1x8x256xf32>,
    %67 = vector.extract_strided_slice %62 {offsets = [0, 256], sizes = [8, 256], strides = [1, 1]} : vector<8x512xf32> to vector<8x256xf32>
    %c1_52 = arith.constant 1 : index
    %c0_53 = arith.constant 0 : index
    %c0_54 = arith.constant 0 : index
    %68 = vector.load %arg7[%c1_52, %c0_53, %c0_54] : memref<2x8x256xf32, #tpu.memory_space<vmem>>, vector<1x8x256xf32>
    %69 = vector.shape_cast %68 : vector<1x8x256xf32> to vector<8x256xf32>
    %70 = vector.shape_cast %67 : vector<8x256xf32> to vector<1x8x256xf32>
    tpu.vector_store %arg7[%c1_52, %c0_53, %c0_54], %70 {strides = array<i32>} : memref<2x8x256xf32, #tpu.memory_space<vmem>>, vector<1x8x256xf32>,
    return
  }
  func.func @transform_0(%arg0: i32, %arg1: i32) -> (i32, i32, i32, i32) {
    %c1_i32 = arith.constant 1 : i32
    %0 = arith.muli %arg0, %c1_i32 : i32
    %1 = arith.addi %0, %arg1 : i32
    %c0_i32 = arith.constant 0 : i32
    %c0_i32_0 = arith.constant 0 : i32
    %c0_i32_1 = arith.constant 0 : i32
    %c0_i32_2 = arith.constant 0 : i32
    return %1, %c0_i32, %c0_i32_0, %c0_i32_1 : i32, i32, i32, i32
  }
  func.func @transform_1(%arg0: i32, %arg1: i32) -> (i32, i32) {
    %c0_i32 = arith.constant 0 : i32
    %c0_i32_0 = arith.constant 0 : i32
    %c0_i32_1 = arith.constant 0 : i32
    return %c0_i32, %c0_i32_0 : i32, i32
  }
  func.func @transform_2(%arg0: i32, %arg1: i32) -> (i32, i32) {
    %c0_i32 = arith.constant 0 : i32
    %c0_i32_0 = arith.constant 0 : i32
    %c0_i32_1 = arith.constant 0 : i32
    return %c0_i32, %c0_i32_0 : i32, i32
  }
  func.func @transform_3(%arg0: i32, %arg1: i32) -> (i32, i32) {
    %c0_i32 = arith.constant 0 : i32
    %c0_i32_0 = arith.constant 0 : i32
    %c0_i32_1 = arith.constant 0 : i32
    return %c0_i32, %c0_i32_0 : i32, i32
  }
  func.func @transform_4(%arg0: i32, %arg1: i32) -> (i32, i32) {
    %c0_i32 = arith.constant 0 : i32
    %c0_i32_0 = arith.constant 0 : i32
    %c0_i32_1 = arith.constant 0 : i32
    return %c0_i32, %c0_i32_0 : i32, i32
  }
  func.func @transform_5(%arg0: i32, %arg1: i32) -> (i32, i32, i32) {
    %c0_i32 = arith.constant 0 : i32
    %c0_i32_0 = arith.constant 0 : i32
    return %arg0, %c0_i32, %arg1 : i32, i32, i32
  }
}

</mosaic_0001>

<llo_original>
// kernel: cnn_block_forward.3
$region0: #{cnn_block_forward.3}
  #allocation0 [shape = 'u32[]', space=smem, size = 0x4, offset = 0x4, fixed_abs, tag = 'smem constant byte address 0x4 - core index']
  #allocation1 [shape = 'u32[72,128]{1,0:T(1,128)}', space=vmem, size = 0x9000, scoped, tag = 'internal scratch']
  #allocation2 [shape = 'bf16[72,512]{1,0:T(8,128)(2,1)}', space=vmem, size = 0x12000, scoped, tag = 'scratch operand']
  %s0 = inlined_call_operand.vmem [shape: bf16[1,2,8,384], index: 0, kind: input, shape index: {}]
  %s1 = inlined_call_operand.vmem [shape: bf16[8,72], index: 1, kind: input, shape index: {}]
  %s2 = inlined_call_operand.vmem [shape: bf16[3,384], index: 2, kind: input, shape index: {}]
  %s3 = inlined_call_operand.vmem [shape: f32[8,1], index: 3, kind: input, shape index: {}]
  %s4 = inlined_call_operand.vmem [shape: f32[8,1], index: 4, kind: input, shape index: {}]
  %s5 = inlined_call_operand.vmem [shape: f32[2,8,256], index: 5, kind: output, shape index: {}]
  %s6 = sld [smem:[#allocation0]]
  $region30: #{cnn_block_forward.3} parent=0
    _
  %s8 = ssub.s32 1, %s6
  %s9 = scalar_select 0, %s8, %s6
  // Predicated region
  $region2: #{cnn_block_forward.3} parent=0 // pred_check
    _
  $region3: #{cnn_block_forward.3} parent=0 // pred_check_branch
    %11 = sbr.rel (0) target = $region5
  $region4: #{cnn_block_forward.3} parent=0 // pred_region
    %s12 = sadd.s32 0, 0
    %p13 = scmp.lt.s32.totalorder %s12, 0
    %s14 = scalar_select %p13, %s12, 0
    %s15 = smul.addr %s14, 6
    %s16 = smul.addr %s15, 4
    %s17 = scalar_lea.vmem %s0, %s16
    %s18 = sadd.s32 0, 0
  $region5: #{cnn_block_forward.3} parent=0 // pred_fallthru
    _
  // Predicated region
  $region6: #{cnn_block_forward.3} parent=0 // pred_check
    _
  $region7: #{cnn_block_forward.3} parent=0 // pred_check_branch
    %20 = sbr.rel (0) target = $region9
  $region8: #{cnn_block_forward.3} parent=0 // pred_region
    _
  $region9: #{cnn_block_forward.3} parent=0 // pred_fallthru
    _
  // Predicated region
  $region10: #{cnn_block_forward.3} parent=0 // pred_check
    _
  $region11: #{cnn_block_forward.3} parent=0 // pred_check_branch
    %22 = sbr.rel (0) target = $region13
  $region12: #{cnn_block_forward.3} parent=0 // pred_region
    _
  $region13: #{cnn_block_forward.3} parent=0 // pred_fallthru
    _
  // Predicated region
  $region14: #{cnn_block_forward.3} parent=0 // pred_check
    _
  $region15: #{cnn_block_forward.3} parent=0 // pred_check_branch
    %24 = sbr.rel (0) target = $region17
  $region16: #{cnn_block_forward.3} parent=0 // pred_region
    _
  $region17: #{cnn_block_forward.3} parent=0 // pred_fallthru
    _
  // Predicated region
  $region18: #{cnn_block_forward.3} parent=0 // pred_check
    _
  $region19: #{cnn_block_forward.3} parent=0 // pred_check_branch
    %26 = sbr.rel (0) target = $region21
  $region20: #{cnn_block_forward.3} parent=0 // pred_region
    _
  $region21: #{cnn_block_forward.3} parent=0 // pred_fallthru
    _
  %s27 = sadd.s32 0, 0
  %p28 = scmp.lt.s32.totalorder %s27, 0
  %s29 = scalar_select %p28, %s27, 0
  %s30 = smul.addr %s29, 6
  %s31 = smul.addr %s30, 4
  %s32 = scalar_lea.vmem %s0, %s31
  %s33 = sadd.s32 0, 0
  %p34 = scmp.lt.s32.totalorder %s33, 0
  %s35 = scalar_select %p34, %s33, 0
  %s36 = smul.addr %s35, 6
  %s37 = smul.addr %s36, 4
  %s38 = scalar_lea.vmem %s0, %s37
  %s39 = sadd.s32 0, 0
  %v41 = vld [vmem:[%s38] sm:$0xff]
  %v42 = vld [vmem:[%s38 + $0x8] sm:$0xf]
  %v43 = vld [vmem:[%s2] sm:$0x15]
  %45 = vst [vmem:[#allocation1] ss:$4 sm:$0xff] %v43
  %v46 = vld.sshfl [vmem:[#allocation1] sm:$0xff pattern:$0x73625140]
  %v47 = vld.sshfl [vmem:[#allocation1 + $0x8] sm:$0xff pattern:$0x73625140]
  %v48 = vld.sshfl [vmem:[#allocation1 + $0x10] sm:$0xff pattern:$0x73625140]
  %v49 = vpack.i.b16 %v46, %v46
  %v51 = vperm.slane %v49, 0
  %v52 = vpack.i.b16 %v47, %v47
  %v54 = vperm.slane %v52, 0
  %v55 = vpack.i.b16 %v48, %v48
  %v57 = vperm.slane %v55, 0
  %v58 = vunpack.c.l.bf16 %v41
  %v59 = vunpack.c.h.bf16 %v41
  %v60 = vunpack.c.l.bf16 %v42
  %v61 = vunpack.c.l.bf16 %v51
  %v62 = vunpack.c.l.bf16 %v54
  %v63 = vunpack.c.l.bf16 %v57
  %v64 = vmul.f32 %v58, %v61
  %v65 = vmul.f32 %v59, %v62
  %v66 = vmul.f32 %v60, %v63
  %v67 = vpack.c.bf16 %v65, %v64
  %v68 = vpack.c.bf16 %v66, %v66
  %v69 = vld [vmem:[%s2] sm:$0x2a]
  %71 = vst [vmem:[#allocation1] ss:$4 sm:$0xff] %v69
  %v72 = vld.sshfl [vmem:[#allocation1] sm:$0xff pattern:$0x73625140]
  %v73 = vld.sshfl [vmem:[#allocation1 + $0x8] sm:$0xff pattern:$0x73625140]
  %v74 = vld.sshfl [vmem:[#allocation1 + $0x10] sm:$0xff pattern:$0x73625140]
  %v75 = vpack.i.b16 %v72, %v72
  %v77 = vperm.slane %v75, 1
  %v78 = vpack.i.b16 %v73, %v73
  %v80 = vperm.slane %v78, 1
  %v81 = vpack.i.b16 %v74, %v74
  %v83 = vperm.slane %v81, 1
  %v84 = vunpack.c.l.bf16 %v77
  %v85 = vunpack.c.l.bf16 %v80
  %v86 = vunpack.c.l.bf16 %v83
  %v87 = vmul.f32 %v58, %v84
  %v88 = vmul.f32 %v59, %v85
  %v89 = vmul.f32 %v60, %v86
  %v90 = vpack.c.bf16 %v88, %v87
  %v91 = vpack.c.bf16 %v89, %v89
  %92 = vst [vmem:[#allocation2] sm:$0xff] %v67
  %95 = vrot.lane.b32.xlu0 %v41, 127
  %v96 = vpop.permute.xlu0 %95
  %97 = vrot.lane.b32.xlu0 %v42, 127
  %v98 = vpop.permute.xlu0 %97
  %v99 = vrot.slane %v96, 4
  %v100 = vrot.slane %v98, 4
  %vm101 = vcmask 1043456
  %v102 = vsel %vm101, %v99, %v100
  %vm103 = vcmask 1039360
  %v104 = vsel %vm103, %v96, %v102
  %106 = vst [vmem:[#allocation2 + $0x10] sm:$0xff] %v104
  %109 = vrot.lane.b32.xlu0 %v90, 126
  %v110 = vpop.permute.xlu0 %109
  %111 = vrot.lane.b32.xlu0 %v91, 126
  %v112 = vpop.permute.xlu0 %111
  %v113 = vrot.slane %v110, 4
  %v114 = vrot.slane %v112, 4
  %v115 = vsel %vm101, %v113, %v114
  %vm116 = vcmask 1031168
  %v117 = vsel %vm116, %v110, %v115
  %119 = vst [vmem:[#allocation2 + $0x20] sm:$0xff] %v117
  %122 = vrot.lane.b32.xlu0 %v67, 112
  %v123 = vpop.permute.xlu0 %122
  %124 = vrot.lane.b32.xlu0 %v68, 112
  %v125 = vpop.permute.xlu0 %124
  %v126 = vrot.slane %v123, 4
  %v127 = vrot.slane %v125, 4
  %v128 = vsel %vm101, %v126, %v127
  %vm129 = vcmask 916480
  %v130 = vsel %vm129, %v123, %v128
  %132 = vst [vmem:[#allocation2 + $0x30] sm:$0xff] %v130
  %133 = vrot.lane.b32.xlu0 %v41, 111
  %v134 = vpop.permute.xlu0 %133
  %135 = vrot.lane.b32.xlu0 %v42, 111
  %v136 = vpop.permute.xlu0 %135
  %v137 = vrot.slane %v134, 4
  %v138 = vrot.slane %v136, 4
  %v139 = vsel %vm101, %v137, %v138
  %vm140 = vcmask 908288
  %v141 = vsel %vm140, %v134, %v139
  %143 = vst [vmem:[#allocation2 + $0x40] sm:$0xff] %v141
  %144 = vrot.lane.b32.xlu0 %v90, 110
  %v145 = vpop.permute.xlu0 %144
  %146 = vrot.lane.b32.xlu0 %v91, 110
  %v147 = vpop.permute.xlu0 %146
  %v148 = vrot.slane %v145, 4
  %v149 = vrot.slane %v147, 4
  %v150 = vsel %vm101, %v148, %v149
  %vm151 = vcmask 900096
  %v152 = vsel %vm151, %v145, %v150
  %154 = vst [vmem:[#allocation2 + $0x50] sm:$0xff] %v152
  %155 = vrot.lane.b32.xlu0 %v67, 96
  %v156 = vpop.permute.xlu0 %155
  %157 = vrot.lane.b32.xlu0 %v68, 96
  %v158 = vpop.permute.xlu0 %157
  %v159 = vrot.slane %v156, 4
  %v160 = vrot.slane %v158, 4
  %v161 = vsel %vm101, %v159, %v160
  %vm162 = vcmask 785408
  %v163 = vsel %vm162, %v156, %v161
  %165 = vst [vmem:[#allocation2 + $0x60] sm:$0xff] %v163
  %166 = vrot.lane.b32.xlu0 %v41, 95
  %v167 = vpop.permute.xlu0 %166
  %168 = vrot.lane.b32.xlu0 %v42, 95
  %v169 = vpop.permute.xlu0 %168
  %v170 = vrot.slane %v167, 4
  %v171 = vrot.slane %v169, 4
  %v172 = vsel %vm101, %v170, %v171
  %vm173 = vcmask 777216
  %v174 = vsel %vm173, %v167, %v172
  %176 = vst [vmem:[#allocation2 + $0x70] sm:$0xff] %v174
  %177 = vrot.lane.b32.xlu0 %v90, 94
  %v178 = vpop.permute.xlu0 %177
  %179 = vrot.lane.b32.xlu0 %v91, 94
  %v180 = vpop.permute.xlu0 %179
  %v181 = vrot.slane %v178, 4
  %v182 = vrot.slane %v180, 4
  %v183 = vsel %vm101, %v181, %v182
  %vm184 = vcmask 769024
  %v185 = vsel %vm184, %v178, %v183
  %187 = vst [vmem:[#allocation2 + $0x80] sm:$0xff] %v185
  %s188 = scalar_lea.vmem %s38, 12
  %v189 = vld [vmem:[%s188] sm:$0xff]
  %v190 = vld [vmem:[%s188 + $0x8] sm:$0xf]
  %v191 = vld [vmem:[%s2] sm:$0x15]
  %193 = vst [vmem:[#allocation1] ss:$4 sm:$0xff] %v191
  %v194 = vld.sshfl [vmem:[#allocation1] sm:$0xff pattern:$0x73625140]
  %v195 = vld.sshfl [vmem:[#allocation1 + $0x8] sm:$0xff pattern:$0x73625140]
  %v196 = vld.sshfl [vmem:[#allocation1 + $0x10] sm:$0xff pattern:$0x73625140]
  %v197 = vpack.i.b16 %v194, %v194
  %v199 = vperm.slane %v197, 0
  %v200 = vpack.i.b16 %v195, %v195
  %v202 = vperm.slane %v200, 0
  %v203 = vpack.i.b16 %v196, %v196
  %v205 = vperm.slane %v203, 0
  %v206 = vunpack.c.l.bf16 %v189
  %v207 = vunpack.c.h.bf16 %v189
  %v208 = vunpack.c.l.bf16 %v190
  %v209 = vunpack.c.l.bf16 %v199
  %v210 = vunpack.c.l.bf16 %v202
  %v211 = vunpack.c.l.bf16 %v205
  %v212 = vmul.f32 %v206, %v209
  %v213 = vmul.f32 %v207, %v210
  %v214 = vmul.f32 %v208, %v211
  %v215 = vpack.c.bf16 %v213, %v212
  %v216 = vpack.c.bf16 %v214, %v214
  %v217 = vld [vmem:[%s2] sm:$0x2a]
  %219 = vst [vmem:[#allocation1] ss:$4 sm:$0xff] %v217
  %v220 = vld.sshfl [vmem:[#allocation1] sm:$0xff pattern:$0x73625140]
  %v221 = vld.sshfl [vmem:[#allocation1 + $0x8] sm:$0xff pattern:$0x73625140]
  %v222 = vld.sshfl [vmem:[#allocation1 + $0x10] sm:$0xff pattern:$0x73625140]
  %v223 = vpack.i.b16 %v220, %v220
  %v225 = vperm.slane %v223, 1
  %v226 = vpack.i.b16 %v221, %v221
  %v228 = vperm.slane %v226, 1
  %v229 = vpack.i.b16 %v222, %v222
  %v231 = vperm.slane %v229, 1
  %v232 = vunpack.c.l.bf16 %v225
  %v233 = vunpack.c.l.bf16 %v228
  %v234 = vunpack.c.l.bf16 %v231
  %v235 = vmul.f32 %v206, %v232
  %v236 = vmul.f32 %v207, %v233
  %v237 = vmul.f32 %v208, %v234
  %v238 = vpack.c.bf16 %v236, %v235
  %v239 = vpack.c.bf16 %v237, %v237
  %240 = vst [vmem:[#allocation2 + $0x8] sm:$0xff] %v215
  %243 = vrot.lane.b32.xlu0 %v189, 127
  %v244 = vpop.permute.xlu0 %243
  %245 = vrot.lane.b32.xlu0 %v190, 127
  %v246 = vpop.permute.xlu0 %245
  %v247 = vrot.slane %v244, 4
  %v248 = vrot.slane %v246, 4
  %v249 = vsel %vm101, %v247, %v248
  %v250 = vsel %vm103, %v244, %v249
  %252 = vst [vmem:[#allocation2 + $0x18] sm:$0xff] %v250
  %255 = vrot.lane.b32.xlu0 %v238, 126
  %v256 = vpop.permute.xlu0 %255
  %257 = vrot.lane.b32.xlu0 %v239, 126
  %v258 = vpop.permute.xlu0 %257
  %v259 = vrot.slane %v256, 4
  %v260 = vrot.slane %v258, 4
  %v261 = vsel %vm101, %v259, %v260
  %v262 = vsel %vm116, %v256, %v261
  %264 = vst [vmem:[#allocation2 + $0x28] sm:$0xff] %v262
  %267 = vrot.lane.b32.xlu0 %v215, 112
  %v268 = vpop.permute.xlu0 %267
  %269 = vrot.lane.b32.xlu0 %v216, 112
  %v270 = vpop.permute.xlu0 %269
  %v271 = vrot.slane %v268, 4
  %v272 = vrot.slane %v270, 4
  %v273 = vsel %vm101, %v271, %v272
  %v274 = vsel %vm129, %v268, %v273
  %276 = vst [vmem:[#allocation2 + $0x38] sm:$0xff] %v274
  %277 = vrot.lane.b32.xlu0 %v189, 111
  %v278 = vpop.permute.xlu0 %277
  %279 = vrot.lane.b32.xlu0 %v190, 111
  %v280 = vpop.permute.xlu0 %279
  %v281 = vrot.slane %v278, 4
  %v282 = vrot.slane %v280, 4
  %v283 = vsel %vm101, %v281, %v282
  %v284 = vsel %vm140, %v278, %v283
  %286 = vst [vmem:[#allocation2 + $0x48] sm:$0xff] %v284
  %287 = vrot.lane.b32.xlu0 %v238, 110
  %v288 = vpop.permute.xlu0 %287
  %289 = vrot.lane.b32.xlu0 %v239, 110
  %v290 = vpop.permute.xlu0 %289
  %v291 = vrot.slane %v288, 4
  %v292 = vrot.slane %v290, 4
  %v293 = vsel %vm101, %v291, %v292
  %v294 = vsel %vm151, %v288, %v293
  %296 = vst [vmem:[#allocation2 + $0x58] sm:$0xff] %v294
  %297 = vrot.lane.b32.xlu0 %v215, 96
  %v298 = vpop.permute.xlu0 %297
  %299 = vrot.lane.b32.xlu0 %v216, 96
  %v300 = vpop.permute.xlu0 %299
  %v301 = vrot.slane %v298, 4
  %v302 = vrot.slane %v300, 4
  %v303 = vsel %vm101, %v301, %v302
  %v304 = vsel %vm162, %v298, %v303
  %306 = vst [vmem:[#allocation2 + $0x68] sm:$0xff] %v304
  %307 = vrot.lane.b32.xlu0 %v189, 95
  %v308 = vpop.permute.xlu0 %307
  %309 = vrot.lane.b32.xlu0 %v190, 95
  %v310 = vpop.permute.xlu0 %309
  %v311 = vrot.slane %v308, 4
  %v312 = vrot.slane %v310, 4
  %v313 = vsel %vm101, %v311, %v312
  %v314 = vsel %vm173, %v308, %v313
  %316 = vst [vmem:[#allocation2 + $0x78] sm:$0xff] %v314
  %317 = vrot.lane.b32.xlu0 %v238, 94
  %v318 = vpop.permute.xlu0 %317
  %319 = vrot.lane.b32.xlu0 %v239, 94
  %v320 = vpop.permute.xlu0 %319
  %v321 = vrot.slane %v318, 4
  %v322 = vrot.slane %v320, 4
  %v323 = vsel %vm101, %v321, %v322
  %v324 = vsel %vm184, %v318, %v323
  %326 = vst [vmem:[#allocation2 + $0x88] sm:$0xff] %v324
  %v327 = vld [vmem:[%s1] sm:$0xf]
  %v328 = vld [vmem:[#allocation2] sm:$0xff]
  %v329 = vld [vmem:[#allocation2 + $0x8] sm:$0xff]
  %v330 = vld [vmem:[#allocation2 + $0x10] sm:$0xff]
  %v331 = vld [vmem:[#allocation2 + $0x18] sm:$0xff]
  %v332 = vld [vmem:[#allocation2 + $0x20] sm:$0xff]
  %v333 = vld [vmem:[#allocation2 + $0x28] sm:$0xff]
  %v334 = vld [vmem:[#allocation2 + $0x30] sm:$0xff]
  %v335 = vld [vmem:[#allocation2 + $0x38] sm:$0xff]
  %v336 = vld [vmem:[#allocation2 + $0x40] sm:$0xff]
  %v337 = vld [vmem:[#allocation2 + $0x48] sm:$0xff]
  %v338 = vld [vmem:[#allocation2 + $0x50] sm:$0xff]
  %v339 = vld [vmem:[#allocation2 + $0x58] sm:$0xff]
  %v340 = vld [vmem:[#allocation2 + $0x60] sm:$0xff]
  %v341 = vld [vmem:[#allocation2 + $0x68] sm:$0xff]
  %v342 = vld [vmem:[#allocation2 + $0x70] sm:$0xff]
  %v343 = vld [vmem:[#allocation2 + $0x78] sm:$0xff]
  %v344 = vld [vmem:[#allocation2 + $0x80] sm:$0xff]
  %v345 = vld [vmem:[#allocation2 + $0x88] sm:$0xff]
  %v364 = vunpack.c.l.b16 %v328
  %v365 = vunpack.c.h.b16 %v328
  %v366 = vunpack.c.l.b16 %v329
  %v367 = vunpack.c.h.b16 %v329
  %v368 = vunpack.c.l.b16 %v330
  %v369 = vunpack.c.h.b16 %v330
  %v370 = vunpack.c.l.b16 %v331
  %v371 = vunpack.c.h.b16 %v331
  %v372 = vunpack.c.l.b16 %v332
  %v373 = vunpack.c.h.b16 %v332
  %v374 = vunpack.c.l.b16 %v333
  %v375 = vunpack.c.h.b16 %v333
  %v376 = vunpack.c.l.b16 %v334
  %v377 = vunpack.c.h.b16 %v334
  %v378 = vunpack.c.l.b16 %v335
  %v379 = vunpack.c.h.b16 %v335
  %v380 = vunpack.c.l.b16 %v336
  %v381 = vunpack.c.h.b16 %v336
  %v382 = vunpack.c.l.b16 %v337
  %v383 = vunpack.c.h.b16 %v337
  %v384 = vunpack.c.l.b16 %v338
  %v385 = vunpack.c.h.b16 %v338
  %v386 = vunpack.c.l.b16 %v339
  %v387 = vunpack.c.h.b16 %v339
  %v388 = vunpack.c.l.b16 %v340
  %v389 = vunpack.c.h.b16 %v340
  %v390 = vunpack.c.l.b16 %v341
  %v391 = vunpack.c.h.b16 %v341
  %v392 = vunpack.c.l.b16 %v342
  %v393 = vunpack.c.h.b16 %v342
  %v394 = vunpack.c.l.b16 %v343
  %v395 = vunpack.c.h.b16 %v343
  %v396 = vunpack.c.l.b16 %v344
  %v397 = vunpack.c.h.b16 %v344
  %v398 = vunpack.c.l.b16 %v345
  %v399 = vunpack.c.h.b16 %v345
  %v400 = vpack.c.b16 %v368, %v364
  %v401 = vpack.c.b16 %v369, %v365
  %v402 = vpack.c.b16 %v370, %v366
  %v403 = vpack.c.b16 %v371, %v367
  %v404 = vpack.c.b16 %v376, %v372
  %v405 = vpack.c.b16 %v377, %v373
  %v406 = vpack.c.b16 %v378, %v374
  %v407 = vpack.c.b16 %v379, %v375
  %v408 = vpack.c.b16 %v384, %v380
  %v409 = vpack.c.b16 %v385, %v381
  %v410 = vpack.c.b16 %v386, %v382
  %v411 = vpack.c.b16 %v387, %v383
  %v412 = vpack.c.b16 %v392, %v388
  %v413 = vpack.c.b16 %v393, %v389
  %v414 = vpack.c.b16 %v394, %v390
  %v415 = vpack.c.b16 %v395, %v391
  %v416 = vpack.c.b16 %v396, %v396
  %v417 = vpack.c.b16 %v397, %v397
  %v418 = vpack.c.b16 %v398, %v398
  %v419 = vpack.c.b16 %v399, %v399
  %vm436 = vcmask 588800
  %v438 = vsel %vm436, %v327, 0
  %vm440 = vcmask 1043456
  %v442 = vsel %vm440, %v416, 0
  %v445 = vsel %vm440, %v417, 0
  %v448 = vsel %vm440, %v418, 0
  %v451 = vsel %vm440, %v419, 0
  %453 = vmatpush.bf16.msra.mxu0 0
  %454 = vmatpush.bf16.msra.mxu0 0
  %455 = vmatpush.bf16.msra.mxu0 0
  %456 = vmatpush.bf16.msra.mxu0 %v442
  %457 = vmatpush.bf16.msra.mxu0 %v412
  %458 = vmatpush.bf16.msra.mxu0 %v408
  %459 = vmatpush.bf16.msra.mxu0 %v404
  %460 = vmatpush.bf16.msra.mxu0 %v400
  %461 = vmatmul.bf16.gmra.mxu0 %v438
  %v462 = vpop.f32.mrf.mxu0
  %v463 = vadd.f32 0.0, %v462
  %v464 = vpop.f32.mrf.mxu0
  %465 = vdwg.mxu0
  %466 = vmatpush.bf16.msra.mxu0 0
  %467 = vmatpush.bf16.msra.mxu0 0
  %468 = vmatpush.bf16.msra.mxu0 0
  %469 = vmatpush.bf16.msra.mxu0 %v445
  %470 = vmatpush.bf16.msra.mxu0 %v413
  %471 = vmatpush.bf16.msra.mxu0 %v409
  %472 = vmatpush.bf16.msra.mxu0 %v405
  %473 = vmatpush.bf16.msra.mxu0 %v401
  %474 = vmatmul.bf16.gmra.mxu0 %v438
  %v475 = vpop.f32.mrf.mxu0
  %v476 = vadd.f32 0.0, %v475
  %v477 = vpop.f32.mrf.mxu0
  %478 = vdwg.mxu0
  %479 = vmatpush.bf16.msra.mxu0 0
  %480 = vmatpush.bf16.msra.mxu0 0
  %481 = vmatpush.bf16.msra.mxu0 0
  %482 = vmatpush.bf16.msra.mxu0 %v448
  %483 = vmatpush.bf16.msra.mxu0 %v414
  %484 = vmatpush.bf16.msra.mxu0 %v410
  %485 = vmatpush.bf16.msra.mxu0 %v406
  %486 = vmatpush.bf16.msra.mxu0 %v402
  %487 = vmatmul.bf16.gmra.mxu0 %v438
  %v488 = vpop.f32.mrf.mxu0
  %v489 = vadd.f32 0.0, %v488
  %v490 = vpop.f32.mrf.mxu0
  %491 = vdwg.mxu0
  %492 = vmatpush.bf16.msra.mxu0 0
  %493 = vmatpush.bf16.msra.mxu0 0
  %494 = vmatpush.bf16.msra.mxu0 0
  %495 = vmatpush.bf16.msra.mxu0 %v451
  %496 = vmatpush.bf16.msra.mxu0 %v415
  %497 = vmatpush.bf16.msra.mxu0 %v411
  %498 = vmatpush.bf16.msra.mxu0 %v407
  %499 = vmatpush.bf16.msra.mxu0 %v403
  %500 = vmatmul.bf16.gmra.mxu0 %v438
  %v501 = vpop.f32.mrf.mxu0
  %v502 = vadd.f32 0.0, %v501
  %v503 = vpop.f32.mrf.mxu0
  %504 = vdwg.mxu0
  %v505 = vld [vmem:[%s3] sm:$0xff]
  %507 = vset.pattern.permute.xlu0 0
  %508 = vperm.xlu0 %507, %v505
  %v509 = vpop.permute.xlu0 %508
  %v511 = vmul.f32 %v463, %v509
  %v512 = vmul.f32 %v476, %v509
  %v513 = vmul.f32 %v489, %v509
  %v514 = vmul.f32 %v502, %v509
  %v515 = vld [vmem:[%s4] sm:$0xff]
  %517 = vset.pattern.permute.xlu0 0
  %518 = vperm.xlu0 %517, %v515
  %v519 = vpop.permute.xlu0 %518
  %v521 = vadd.f32 %v511, %v519
  %v522 = vadd.f32 %v512, %v519
  %v523 = vadd.f32 %v513, %v519
  %v524 = vadd.f32 %v514, %v519
  %v525 = vmax.f32 %v521, 0.0
  %v526 = vmax.f32 %v522, 0.0
  %v527 = vmax.f32 %v523, 0.0
  %v528 = vmax.f32 %v524, 0.0
  %529 = vst [vmem:[%s5] sm:$0xff] %v525
  %530 = vst [vmem:[%s5 + $0x8] sm:$0xff] %v526
  %s531 = scalar_lea.vmem %s5, 16
  %532 = vst [vmem:[%s531] sm:$0xff] %v527
  %533 = vst [vmem:[%s531 + $0x8] sm:$0xff] %v528
  // Predicated region
  $region22: #{cnn_block_forward.3} parent=0 // pred_check
    _
  $region23: #{cnn_block_forward.3} parent=0 // pred_check_branch
    %535 = sbr.rel (0) target = $region25
  $region24: #{cnn_block_forward.3} parent=0 // pred_region
    _
  $region25: #{cnn_block_forward.3} parent=0 // pred_fallthru
    _
  // Predicated region
  $region26: #{cnn_block_forward.3} parent=0 // pred_check
    _
  $region27: #{cnn_block_forward.3} parent=0 // pred_check_branch
    %537 = sbr.rel (0) target = $region29
  $region28: #{cnn_block_forward.3} parent=0 // pred_region
    _
  $region29: #{cnn_block_forward.3} parent=0 // pred_fallthru
    _

// kernel: cnn_block_forward.2
$region0: #{cnn_block_forward.2}
  #allocation0 [shape = 'u32[]', space=smem, size = 0x4, offset = 0x4, fixed_abs, tag = 'smem constant byte address 0x4 - core index']
  #allocation1 [shape = 'u32[72,128]{1,0:T(1,128)}', space=vmem, size = 0x9000, scoped, tag = 'internal scratch']
  #allocation2 [shape = 'bf16[72,512]{1,0:T(8,128)(2,1)}', space=vmem, size = 0x12000, scoped, tag = 'scratch operand']
  %s0 = inlined_call_operand.vmem [shape: bf16[1,2,8,384], index: 0, kind: input, shape index: {}]
  %s1 = inlined_call_operand.vmem [shape: bf16[8,72], index: 1, kind: input, shape index: {}]
  %s2 = inlined_call_operand.vmem [shape: bf16[3,384], index: 2, kind: input, shape index: {}]
  %s3 = inlined_call_operand.vmem [shape: f32[1,8,1], index: 3, kind: output, shape index: {0}]
  %s4 = inlined_call_operand.vmem [shape: f32[1,8,1], index: 4, kind: output, shape index: {1}]
  %5 = xla_tuple %s3, %s4
  %s6 = sld [smem:[#allocation0]]
  $region30: #{cnn_block_forward.2} parent=0
    _
  %s8 = ssub.s32 1, %s6
  %s9 = scalar_select 0, %s8, %s6
  // Predicated region
  $region2: #{cnn_block_forward.2} parent=0 // pred_check
    _
  $region3: #{cnn_block_forward.2} parent=0 // pred_check_branch
    %11 = sbr.rel (0) target = $region5
  $region4: #{cnn_block_forward.2} parent=0 // pred_region
    %s12 = sadd.s32 0, 0
    %p13 = scmp.lt.s32.totalorder %s12, 0
    %s14 = scalar_select %p13, %s12, 0
    %s15 = smul.addr %s14, 6
    %s16 = smul.addr %s15, 4
    %s17 = scalar_lea.vmem %s0, %s16
    %s18 = sadd.s32 0, 0
  $region5: #{cnn_block_forward.2} parent=0 // pred_fallthru
    _
  // Predicated region
  $region6: #{cnn_block_forward.2} parent=0 // pred_check
    _
  $region7: #{cnn_block_forward.2} parent=0 // pred_check_branch
    %20 = sbr.rel (0) target = $region9
  $region8: #{cnn_block_forward.2} parent=0 // pred_region
    _
  $region9: #{cnn_block_forward.2} parent=0 // pred_fallthru
    _
  // Predicated region
  $region10: #{cnn_block_forward.2} parent=0 // pred_check
    _
  $region11: #{cnn_block_forward.2} parent=0 // pred_check_branch
    %22 = sbr.rel (0) target = $region13
  $region12: #{cnn_block_forward.2} parent=0 // pred_region
    _
  $region13: #{cnn_block_forward.2} parent=0 // pred_fallthru
    _
  %s23 = sadd.s32 0, 0
  %p24 = scmp.lt.s32.totalorder %s23, 0
  %s25 = scalar_select %p24, %s23, 0
  %s26 = smul.addr %s25, 6
  %s27 = smul.addr %s26, 4
  %s28 = scalar_lea.vmem %s0, %s27
  %s29 = sadd.s32 0, 0
  %p30 = scmp.lt.s32.totalorder %s29, 0
  %s31 = scalar_select %p30, %s29, 0
  %s32 = smul.addr %s31, 8
  %s33 = scalar_lea.vmem %s3, %s32
  %s34 = sadd.s32 0, 0
  %p35 = scmp.lt.s32.totalorder %s34, 0
  %s36 = scalar_select %p35, %s34, 0
  %s37 = smul.addr %s36, 8
  %s38 = scalar_lea.vmem %s4, %s37
  %s39 = sadd.s32 0, 0
  %p40 = scmp.lt.s32.totalorder %s39, 0
  %s41 = scalar_select %p40, %s39, 0
  %s42 = smul.addr %s41, 6
  %s43 = smul.addr %s42, 4
  %s44 = scalar_lea.vmem %s0, %s43
  %s45 = sadd.s32 0, 0
  %s46 = sadd.s32 0, 0
  %p47 = scmp.lt.s32.totalorder %s46, 0
  %s48 = scalar_select %p47, %s46, 0
  %s49 = smul.addr %s48, 8
  %s50 = scalar_lea.vmem %s3, %s49
  %s51 = sadd.s32 0, 0
  %s52 = sadd.s32 0, 0
  %p53 = scmp.lt.s32.totalorder %s52, 0
  %s54 = scalar_select %p53, %s52, 0
  %s55 = smul.addr %s54, 8
  %s56 = scalar_lea.vmem %s4, %s55
  %s57 = sadd.s32 0, 0
  %v59 = vld [vmem:[%s44] sm:$0xff]
  %v60 = vld [vmem:[%s44 + $0x8] sm:$0xf]
  %v61 = vld [vmem:[%s2] sm:$0x15]
  %63 = vst [vmem:[#allocation1] ss:$4 sm:$0xff] %v61
  %v64 = vld.sshfl [vmem:[#allocation1] sm:$0xff pattern:$0x73625140]
  %v65 = vld.sshfl [vmem:[#allocation1 + $0x8] sm:$0xff pattern:$0x73625140]
  %v66 = vld.sshfl [vmem:[#allocation1 + $0x10] sm:$0xff pattern:$0x73625140]
  %v67 = vpack.i.b16 %v64, %v64
  %v69 = vperm.slane %v67, 0
  %v70 = vpack.i.b16 %v65, %v65
  %v72 = vperm.slane %v70, 0
  %v73 = vpack.i.b16 %v66, %v66
  %v75 = vperm.slane %v73, 0
  %v76 = vunpack.c.l.bf16 %v59
  %v77 = vunpack.c.h.bf16 %v59
  %v78 = vunpack.c.l.bf16 %v60
  %v79 = vunpack.c.l.bf16 %v69
  %v80 = vunpack.c.l.bf16 %v72
  %v81 = vunpack.c.l.bf16 %v75
  %v82 = vmul.f32 %v76, %v79
  %v83 = vmul.f32 %v77, %v80
  %v84 = vmul.f32 %v78, %v81
  %v85 = vpack.c.bf16 %v83, %v82
  %v86 = vpack.c.bf16 %v84, %v84
  %v87 = vld [vmem:[%s2] sm:$0x2a]
  %89 = vst [vmem:[#allocation1] ss:$4 sm:$0xff] %v87
  %v90 = vld.sshfl [vmem:[#allocation1] sm:$0xff pattern:$0x73625140]
  %v91 = vld.sshfl [vmem:[#allocation1 + $0x8] sm:$0xff pattern:$0x73625140]
  %v92 = vld.sshfl [vmem:[#allocation1 + $0x10] sm:$0xff pattern:$0x73625140]
  %v93 = vpack.i.b16 %v90, %v90
  %v95 = vperm.slane %v93, 1
  %v96 = vpack.i.b16 %v91, %v91
  %v98 = vperm.slane %v96, 1
  %v99 = vpack.i.b16 %v92, %v92
  %v101 = vperm.slane %v99, 1
  %v102 = vunpack.c.l.bf16 %v95
  %v103 = vunpack.c.l.bf16 %v98
  %v104 = vunpack.c.l.bf16 %v101
  %v105 = vmul.f32 %v76, %v102
  %v106 = vmul.f32 %v77, %v103
  %v107 = vmul.f32 %v78, %v104
  %v108 = vpack.c.bf16 %v106, %v105
  %v109 = vpack.c.bf16 %v107, %v107
  %110 = vst [vmem:[#allocation2] sm:$0xff] %v85
  %113 = vrot.lane.b32.xlu0 %v59, 127
  %v114 = vpop.permute.xlu0 %113
  %115 = vrot.lane.b32.xlu0 %v60, 127
  %v116 = vpop.permute.xlu0 %115
  %v117 = vrot.slane %v114, 4
  %v118 = vrot.slane %v116, 4
  %vm119 = vcmask 1043456
  %v120 = vsel %vm119, %v117, %v118
  %vm121 = vcmask 1039360
  %v122 = vsel %vm121, %v114, %v120
  %124 = vst [vmem:[#allocation2 + $0x10] sm:$0xff] %v122
  %127 = vrot.lane.b32.xlu0 %v108, 126
  %v128 = vpop.permute.xlu0 %127
  %129 = vrot.lane.b32.xlu0 %v109, 126
  %v130 = vpop.permute.xlu0 %129
  %v131 = vrot.slane %v128, 4
  %v132 = vrot.slane %v130, 4
  %v133 = vsel %vm119, %v131, %v132
  %vm134 = vcmask 1031168
  %v135 = vsel %vm134, %v128, %v133
  %137 = vst [vmem:[#allocation2 + $0x20] sm:$0xff] %v135
  %140 = vrot.lane.b32.xlu0 %v85, 112
  %v141 = vpop.permute.xlu0 %140
  %142 = vrot.lane.b32.xlu0 %v86, 112
  %v143 = vpop.permute.xlu0 %142
  %v144 = vrot.slane %v141, 4
  %v145 = vrot.slane %v143, 4
  %v146 = vsel %vm119, %v144, %v145
  %vm147 = vcmask 916480
  %v148 = vsel %vm147, %v141, %v146
  %150 = vst [vmem:[#allocation2 + $0x30] sm:$0xff] %v148
  %151 = vrot.lane.b32.xlu0 %v59, 111
  %v152 = vpop.permute.xlu0 %151
  %153 = vrot.lane.b32.xlu0 %v60, 111
  %v154 = vpop.permute.xlu0 %153
  %v155 = vrot.slane %v152, 4
  %v156 = vrot.slane %v154, 4
  %v157 = vsel %vm119, %v155, %v156
  %vm158 = vcmask 908288
  %v159 = vsel %vm158, %v152, %v157
  %161 = vst [vmem:[#allocation2 + $0x40] sm:$0xff] %v159
  %162 = vrot.lane.b32.xlu0 %v108, 110
  %v163 = vpop.permute.xlu0 %162
  %164 = vrot.lane.b32.xlu0 %v109, 110
  %v165 = vpop.permute.xlu0 %164
  %v166 = vrot.slane %v163, 4
  %v167 = vrot.slane %v165, 4
  %v168 = vsel %vm119, %v166, %v167
  %vm169 = vcmask 900096
  %v170 = vsel %vm169, %v163, %v168
  %172 = vst [vmem:[#allocation2 + $0x50] sm:$0xff] %v170
  %173 = vrot.lane.b32.xlu0 %v85, 96
  %v174 = vpop.permute.xlu0 %173
  %175 = vrot.lane.b32.xlu0 %v86, 96
  %v176 = vpop.permute.xlu0 %175
  %v177 = vrot.slane %v174, 4
  %v178 = vrot.slane %v176, 4
  %v179 = vsel %vm119, %v177, %v178
  %vm180 = vcmask 785408
  %v181 = vsel %vm180, %v174, %v179
  %183 = vst [vmem:[#allocation2 + $0x60] sm:$0xff] %v181
  %184 = vrot.lane.b32.xlu0 %v59, 95
  %v185 = vpop.permute.xlu0 %184
  %186 = vrot.lane.b32.xlu0 %v60, 95
  %v187 = vpop.permute.xlu0 %186
  %v188 = vrot.slane %v185, 4
  %v189 = vrot.slane %v187, 4
  %v190 = vsel %vm119, %v188, %v189
  %vm191 = vcmask 777216
  %v192 = vsel %vm191, %v185, %v190
  %194 = vst [vmem:[#allocation2 + $0x70] sm:$0xff] %v192
  %195 = vrot.lane.b32.xlu0 %v108, 94
  %v196 = vpop.permute.xlu0 %195
  %197 = vrot.lane.b32.xlu0 %v109, 94
  %v198 = vpop.permute.xlu0 %197
  %v199 = vrot.slane %v196, 4
  %v200 = vrot.slane %v198, 4
  %v201 = vsel %vm119, %v199, %v200
  %vm202 = vcmask 769024
  %v203 = vsel %vm202, %v196, %v201
  %205 = vst [vmem:[#allocation2 + $0x80] sm:$0xff] %v203
  %s206 = scalar_lea.vmem %s44, 12
  %v207 = vld [vmem:[%s206] sm:$0xff]
  %v208 = vld [vmem:[%s206 + $0x8] sm:$0xf]
  %v209 = vld [vmem:[%s2] sm:$0x15]
  %211 = vst [vmem:[#allocation1] ss:$4 sm:$0xff] %v209
  %v212 = vld.sshfl [vmem:[#allocation1] sm:$0xff pattern:$0x73625140]
  %v213 = vld.sshfl [vmem:[#allocation1 + $0x8] sm:$0xff pattern:$0x73625140]
  %v214 = vld.sshfl [vmem:[#allocation1 + $0x10] sm:$0xff pattern:$0x73625140]
  %v215 = vpack.i.b16 %v212, %v212
  %v217 = vperm.slane %v215, 0
  %v218 = vpack.i.b16 %v213, %v213
  %v220 = vperm.slane %v218, 0
  %v221 = vpack.i.b16 %v214, %v214
  %v223 = vperm.slane %v221, 0
  %v224 = vunpack.c.l.bf16 %v207
  %v225 = vunpack.c.h.bf16 %v207
  %v226 = vunpack.c.l.bf16 %v208
  %v227 = vunpack.c.l.bf16 %v217
  %v228 = vunpack.c.l.bf16 %v220
  %v229 = vunpack.c.l.bf16 %v223
  %v230 = vmul.f32 %v224, %v227
  %v231 = vmul.f32 %v225, %v228
  %v232 = vmul.f32 %v226, %v229
  %v233 = vpack.c.bf16 %v231, %v230
  %v234 = vpack.c.bf16 %v232, %v232
  %v235 = vld [vmem:[%s2] sm:$0x2a]
  %237 = vst [vmem:[#allocation1] ss:$4 sm:$0xff] %v235
  %v238 = vld.sshfl [vmem:[#allocation1] sm:$0xff pattern:$0x73625140]
  %v239 = vld.sshfl [vmem:[#allocation1 + $0x8] sm:$0xff pattern:$0x73625140]
  %v240 = vld.sshfl [vmem:[#allocation1 + $0x10] sm:$0xff pattern:$0x73625140]
  %v241 = vpack.i.b16 %v238, %v238
  %v243 = vperm.slane %v241, 1
  %v244 = vpack.i.b16 %v239, %v239
  %v246 = vperm.slane %v244, 1
  %v247 = vpack.i.b16 %v240, %v240
  %v249 = vperm.slane %v247, 1
  %v250 = vunpack.c.l.bf16 %v243
  %v251 = vunpack.c.l.bf16 %v246
  %v252 = vunpack.c.l.bf16 %v249
  %v253 = vmul.f32 %v224, %v250
  %v254 = vmul.f32 %v225, %v251
  %v255 = vmul.f32 %v226, %v252
  %v256 = vpack.c.bf16 %v254, %v253
  %v257 = vpack.c.bf16 %v255, %v255
  %258 = vst [vmem:[#allocation2 + $0x8] sm:$0xff] %v233
  %261 = vrot.lane.b32.xlu0 %v207, 127
  %v262 = vpop.permute.xlu0 %261
  %263 = vrot.lane.b32.xlu0 %v208, 127
  %v264 = vpop.permute.xlu0 %263
  %v265 = vrot.slane %v262, 4
  %v266 = vrot.slane %v264, 4
  %v267 = vsel %vm119, %v265, %v266
  %v268 = vsel %vm121, %v262, %v267
  %270 = vst [vmem:[#allocation2 + $0x18] sm:$0xff] %v268
  %273 = vrot.lane.b32.xlu0 %v256, 126
  %v274 = vpop.permute.xlu0 %273
  %275 = vrot.lane.b32.xlu0 %v257, 126
  %v276 = vpop.permute.xlu0 %275
  %v277 = vrot.slane %v274, 4
  %v278 = vrot.slane %v276, 4
  %v279 = vsel %vm119, %v277, %v278
  %v280 = vsel %vm134, %v274, %v279
  %282 = vst [vmem:[#allocation2 + $0x28] sm:$0xff] %v280
  %285 = vrot.lane.b32.xlu0 %v233, 112
  %v286 = vpop.permute.xlu0 %285
  %287 = vrot.lane.b32.xlu0 %v234, 112
  %v288 = vpop.permute.xlu0 %287
  %v289 = vrot.slane %v286, 4
  %v290 = vrot.slane %v288, 4
  %v291 = vsel %vm119, %v289, %v290
  %v292 = vsel %vm147, %v286, %v291
  %294 = vst [vmem:[#allocation2 + $0x38] sm:$0xff] %v292
  %295 = vrot.lane.b32.xlu0 %v207, 111
  %v296 = vpop.permute.xlu0 %295
  %297 = vrot.lane.b32.xlu0 %v208, 111
  %v298 = vpop.permute.xlu0 %297
  %v299 = vrot.slane %v296, 4
  %v300 = vrot.slane %v298, 4
  %v301 = vsel %vm119, %v299, %v300
  %v302 = vsel %vm158, %v296, %v301
  %304 = vst [vmem:[#allocation2 + $0x48] sm:$0xff] %v302
  %305 = vrot.lane.b32.xlu0 %v256, 110
  %v306 = vpop.permute.xlu0 %305
  %307 = vrot.lane.b32.xlu0 %v257, 110
  %v308 = vpop.permute.xlu0 %307
  %v309 = vrot.slane %v306, 4
  %v310 = vrot.slane %v308, 4
  %v311 = vsel %vm119, %v309, %v310
  %v312 = vsel %vm169, %v306, %v311
  %314 = vst [vmem:[#allocation2 + $0x58] sm:$0xff] %v312
  %315 = vrot.lane.b32.xlu0 %v233, 96
  %v316 = vpop.permute.xlu0 %315
  %317 = vrot.lane.b32.xlu0 %v234, 96
  %v318 = vpop.permute.xlu0 %317
  %v319 = vrot.slane %v316, 4
  %v320 = vrot.slane %v318, 4
  %v321 = vsel %vm119, %v319, %v320
  %v322 = vsel %vm180, %v316, %v321
  %324 = vst [vmem:[#allocation2 + $0x68] sm:$0xff] %v322
  %325 = vrot.lane.b32.xlu0 %v207, 95
  %v326 = vpop.permute.xlu0 %325
  %327 = vrot.lane.b32.xlu0 %v208, 95
  %v328 = vpop.permute.xlu0 %327
  %v329 = vrot.slane %v326, 4
  %v330 = vrot.slane %v328, 4
  %v331 = vsel %vm119, %v329, %v330
  %v332 = vsel %vm191, %v326, %v331
  %334 = vst [vmem:[#allocation2 + $0x78] sm:$0xff] %v332
  %335 = vrot.lane.b32.xlu0 %v256, 94
  %v336 = vpop.permute.xlu0 %335
  %337 = vrot.lane.b32.xlu0 %v257, 94
  %v338 = vpop.permute.xlu0 %337
  %v339 = vrot.slane %v336, 4
  %v340 = vrot.slane %v338, 4
  %v341 = vsel %vm119, %v339, %v340
  %v342 = vsel %vm202, %v336, %v341
  %344 = vst [vmem:[#allocation2 + $0x88] sm:$0xff] %v342
  %v345 = vld [vmem:[%s1] sm:$0xf]
  %v346 = vld [vmem:[#allocation2] sm:$0xff]
  %v347 = vld [vmem:[#allocation2 + $0x8] sm:$0xff]
  %v348 = vld [vmem:[#allocation2 + $0x10] sm:$0xff]
  %v349 = vld [vmem:[#allocation2 + $0x18] sm:$0xff]
  %v350 = vld [vmem:[#allocation2 + $0x20] sm:$0xff]
  %v351 = vld [vmem:[#allocation2 + $0x28] sm:$0xff]
  %v352 = vld [vmem:[#allocation2 + $0x30] sm:$0xff]
  %v353 = vld [vmem:[#allocation2 + $0x38] sm:$0xff]
  %v354 = vld [vmem:[#allocation2 + $0x40] sm:$0xff]
  %v355 = vld [vmem:[#allocation2 + $0x48] sm:$0xff]
  %v356 = vld [vmem:[#allocation2 + $0x50] sm:$0xff]
  %v357 = vld [vmem:[#allocation2 + $0x58] sm:$0xff]
  %v358 = vld [vmem:[#allocation2 + $0x60] sm:$0xff]
  %v359 = vld [vmem:[#allocation2 + $0x68] sm:$0xff]
  %v360 = vld [vmem:[#allocation2 + $0x70] sm:$0xff]
  %v361 = vld [vmem:[#allocation2 + $0x78] sm:$0xff]
  %v362 = vld [vmem:[#allocation2 + $0x80] sm:$0xff]
  %v363 = vld [vmem:[#allocation2 + $0x88] sm:$0xff]
  %v382 = vunpack.c.l.b16 %v346
  %v383 = vunpack.c.h.b16 %v346
  %v384 = vunpack.c.l.b16 %v347
  %v385 = vunpack.c.h.b16 %v347
  %v386 = vunpack.c.l.b16 %v348
  %v387 = vunpack.c.h.b16 %v348
  %v388 = vunpack.c.l.b16 %v349
  %v389 = vunpack.c.h.b16 %v349
  %v390 = vunpack.c.l.b16 %v350
  %v391 = vunpack.c.h.b16 %v350
  %v392 = vunpack.c.l.b16 %v351
  %v393 = vunpack.c.h.b16 %v351
  %v394 = vunpack.c.l.b16 %v352
  %v395 = vunpack.c.h.b16 %v352
  %v396 = vunpack.c.l.b16 %v353
  %v397 = vunpack.c.h.b16 %v353
  %v398 = vunpack.c.l.b16 %v354
  %v399 = vunpack.c.h.b16 %v354
  %v400 = vunpack.c.l.b16 %v355
  %v401 = vunpack.c.h.b16 %v355
  %v402 = vunpack.c.l.b16 %v356
  %v403 = vunpack.c.h.b16 %v356
  %v404 = vunpack.c.l.b16 %v357
  %v405 = vunpack.c.h.b16 %v357
  %v406 = vunpack.c.l.b16 %v358
  %v407 = vunpack.c.h.b16 %v358
  %v408 = vunpack.c.l.b16 %v359
  %v409 = vunpack.c.h.b16 %v359
  %v410 = vunpack.c.l.b16 %v360
  %v411 = vunpack.c.h.b16 %v360
  %v412 = vunpack.c.l.b16 %v361
  %v413 = vunpack.c.h.b16 %v361
  %v414 = vunpack.c.l.b16 %v362
  %v415 = vunpack.c.h.b16 %v362
  %v416 = vunpack.c.l.b16 %v363
  %v417 = vunpack.c.h.b16 %v363
  %v418 = vpack.c.b16 %v386, %v382
  %v419 = vpack.c.b16 %v387, %v383
  %v420 = vpack.c.b16 %v388, %v384
  %v421 = vpack.c.b16 %v389, %v385
  %v422 = vpack.c.b16 %v394, %v390
  %v423 = vpack.c.b16 %v395, %v391
  %v424 = vpack.c.b16 %v396, %v392
  %v425 = vpack.c.b16 %v397, %v393
  %v426 = vpack.c.b16 %v402, %v398
  %v427 = vpack.c.b16 %v403, %v399
  %v428 = vpack.c.b16 %v404, %v400
  %v429 = vpack.c.b16 %v405, %v401
  %v430 = vpack.c.b16 %v410, %v406
  %v431 = vpack.c.b16 %v411, %v407
  %v432 = vpack.c.b16 %v412, %v408
  %v433 = vpack.c.b16 %v413, %v409
  %v434 = vpack.c.b16 %v414, %v414
  %v435 = vpack.c.b16 %v415, %v415
  %v436 = vpack.c.b16 %v416, %v416
  %v437 = vpack.c.b16 %v417, %v417
  %vm454 = vcmask 588800
  %v456 = vsel %vm454, %v345, 0
  %vm458 = vcmask 1043456
  %v460 = vsel %vm458, %v434, 0
  %v463 = vsel %vm458, %v435, 0
  %v466 = vsel %vm458, %v436, 0
  %v469 = vsel %vm458, %v437, 0
  %471 = vmatpush.bf16.msra.mxu0 0
  %472 = vmatpush.bf16.msra.mxu0 0
  %473 = vmatpush.bf16.msra.mxu0 0
  %474 = vmatpush.bf16.msra.mxu0 %v460
  %475 = vmatpush.bf16.msra.mxu0 %v430
  %476 = vmatpush.bf16.msra.mxu0 %v426
  %477 = vmatpush.bf16.msra.mxu0 %v422
  %478 = vmatpush.bf16.msra.mxu0 %v418
  %479 = vmatmul.bf16.gmra.mxu0 %v456
  %v480 = vpop.f32.mrf.mxu0
  %v481 = vadd.f32 0.0, %v480
  %v482 = vpop.f32.mrf.mxu0
  %483 = vdwg.mxu0
  %484 = vmatpush.bf16.msra.mxu0 0
  %485 = vmatpush.bf16.msra.mxu0 0
  %486 = vmatpush.bf16.msra.mxu0 0
  %487 = vmatpush.bf16.msra.mxu0 %v463
  %488 = vmatpush.bf16.msra.mxu0 %v431
  %489 = vmatpush.bf16.msra.mxu0 %v427
  %490 = vmatpush.bf16.msra.mxu0 %v423
  %491 = vmatpush.bf16.msra.mxu0 %v419
  %492 = vmatmul.bf16.gmra.mxu0 %v456
  %v493 = vpop.f32.mrf.mxu0
  %v494 = vadd.f32 0.0, %v493
  %v495 = vpop.f32.mrf.mxu0
  %496 = vdwg.mxu0
  %497 = vmatpush.bf16.msra.mxu0 0
  %498 = vmatpush.bf16.msra.mxu0 0
  %499 = vmatpush.bf16.msra.mxu0 0
  %500 = vmatpush.bf16.msra.mxu0 %v466
  %501 = vmatpush.bf16.msra.mxu0 %v432
  %502 = vmatpush.bf16.msra.mxu0 %v428
  %503 = vmatpush.bf16.msra.mxu0 %v424
  %504 = vmatpush.bf16.msra.mxu0 %v420
  %505 = vmatmul.bf16.gmra.mxu0 %v456
  %v506 = vpop.f32.mrf.mxu0
  %v507 = vadd.f32 0.0, %v506
  %v508 = vpop.f32.mrf.mxu0
  %509 = vdwg.mxu0
  %510 = vmatpush.bf16.msra.mxu0 0
  %511 = vmatpush.bf16.msra.mxu0 0
  %512 = vmatpush.bf16.msra.mxu0 0
  %513 = vmatpush.bf16.msra.mxu0 %v469
  %514 = vmatpush.bf16.msra.mxu0 %v433
  %515 = vmatpush.bf16.msra.mxu0 %v429
  %516 = vmatpush.bf16.msra.mxu0 %v425
  %517 = vmatpush.bf16.msra.mxu0 %v421
  %518 = vmatmul.bf16.gmra.mxu0 %v456
  %v519 = vpop.f32.mrf.mxu0
  %v520 = vadd.f32 0.0, %v519
  %v521 = vpop.f32.mrf.mxu0
  %522 = vdwg.mxu0
  %v523 = vadd.f32 %v481, %v494
  %v524 = vadd.f32 %v523, %v507
  %v525 = vadd.f32 %v524, %v520
  %526 = vadd.xlane.f32.xlu0 %v525
  %v527 = vpop.xlane.xlu0 %526
  %vm528 = vcmask 7168
  %529 = vst.msk [vmem:[%s50] sm:$0xff] %vm528, %v527
  %v530 = vmul.f32 %v481, %v481
  %v531 = vmul.f32 %v494, %v494
  %v532 = vmul.f32 %v507, %v507
  %v533 = vmul.f32 %v520, %v520
  %v534 = vadd.f32 %v530, %v531
  %v535 = vadd.f32 %v534, %v532
  %v536 = vadd.f32 %v535, %v533
  %537 = vadd.xlane.f32.xlu0 %v536
  %v538 = vpop.xlane.xlu0 %537
  %539 = vst.msk [vmem:[%s56] sm:$0xff] %vm528, %v538
  %s540 = sadd.s32 0, 0
  %p541 = scmp.lt.s32.totalorder %s540, 0
  %s542 = scalar_select %p541, %s540, 0
  %s543 = smul.addr %s542, 8
  %s544 = scalar_lea.vmem %s3, %s543
  %s545 = sadd.s32 0, 0
  %p546 = scmp.lt.s32.totalorder %s545, 0
  %s547 = scalar_select %p546, %s545, 0
  %s548 = smul.addr %s547, 8
  %s549 = scalar_lea.vmem %s4, %s548
  // Predicated region
  $region14: #{cnn_block_forward.2} parent=0 // pred_check
    _
  $region15: #{cnn_block_forward.2} parent=0 // pred_check_branch
    %551 = sbr.rel (0) target = $region17
  $region16: #{cnn_block_forward.2} parent=0 // pred_region
    %s552 = sadd.s32 0, 0
  $region17: #{cnn_block_forward.2} parent=0 // pred_fallthru
    _
  // Predicated region
  $region18: #{cnn_block_forward.2} parent=0 // pred_check
    _
  $region19: #{cnn_block_forward.2} parent=0 // pred_check_branch
    %554 = sbr.rel (0) target = $region21
  $region20: #{cnn_block_forward.2} parent=0 // pred_region
    %s555 = sadd.s32 0, 0
  $region21: #{cnn_block_forward.2} parent=0 // pred_fallthru
    _
  // Predicated region
  $region22: #{cnn_block_forward.2} parent=0 // pred_check
    _
  $region23: #{cnn_block_forward.2} parent=0 // pred_check_branch
    %557 = sbr.rel (0) target = $region25
  $region24: #{cnn_block_forward.2} parent=0 // pred_region
    %s558 = sadd.s32 0, 0
    %p559 = scmp.lt.s32.totalorder %s558, 0
    %s560 = scalar_select %p559, %s558, 0
    %s561 = smul.addr %s560, 8
    %s562 = scalar_lea.vmem %s3, %s561
  $region25: #{cnn_block_forward.2} parent=0 // pred_fallthru
    _
  // Predicated region
  $region26: #{cnn_block_forward.2} parent=0 // pred_check
    _
  $region27: #{cnn_block_forward.2} parent=0 // pred_check_branch
    %564 = sbr.rel (0) target = $region29
  $region28: #{cnn_block_forward.2} parent=0 // pred_region
    %s565 = sadd.s32 0, 0
    %p566 = scmp.lt.s32.totalorder %s565, 0
    %s567 = scalar_select %p566, %s565, 0
    %s568 = smul.addr %s567, 8
    %s569 = scalar_lea.vmem %s4, %s568
  $region29: #{cnn_block_forward.2} parent=0 // pred_fallthru
    _

</llo_original>
